<compile_context>
chip_gen: v7x
topology: tpu7x:2x2x1
jax: 0.10.0
libtpu: 0.0.40
codegen_flags: <defaults>
</compile_context>

<pallas_src>
import functools

import jax
import jax.numpy as jnp
from jax import lax
from jax.experimental import pallas as pl
from jax.experimental.pallas import tpu as pltpu


# ----------------------------------------------------------------------------
# Pallas kernel: one (batch, output-row-tile) step of conv + folded BN + ReLU
# ----------------------------------------------------------------------------
def _bnconv_kernel(x_ref, w_ref, bias_ref, o_ref, *,
                   kh_size, kw_size, tile_h, wo, cin, relu):
    # x_ref:    (1, Hp_pad, Wp, Cin)   bf16 padded input (whole image, resident across row tiles)
    # w_ref:    (KH*KW*Cin, Cout)      bf16 im2col-ordered weights, BN scale pre-folded
    # bias_ref: (1, Cout)              f32  folded BN bias (+ conv bias)
    # o_ref:    (1, TILE_H, Wo, Cout)  output row tile
    cout = o_ref.shape[-1]
    m = tile_h * wo
    row0 = pl.multiple_of(pl.program_id(1) * tile_h, tile_h)

    # Row band covering this output tile, loaded once from the VMEM-resident image.
    band = x_ref[0, pl.ds(row0, tile_h + kh_size - 1), :, :]   # (TILE_H+KH-1, Wp, Cin)

    # Per-tap accumulation (review item 1): KH*KW small-K MXU matmuls into an f32
    # accumulator; no concatenated im2col patch is ever materialized.
    acc = jnp.zeros((m, cout), jnp.float32)
    for dh in range(kh_size):                       # static unroll (<= ~25 taps)
        rows = band[dh:dh + tile_h]                 # (TILE_H, Wp, Cin)
        for dw in range(kw_size):
            tap = rows[:, dw:dw + wo, :].reshape(m, cin)        # (M, Cin) bf16
            t0 = (dh * kw_size + dw) * cin
            acc += jnp.dot(tap, w_ref[t0:t0 + cin, :],
                           preferred_element_type=jnp.float32)  # (M, Cout) f32

    y = acc + bias_ref[...]                         # folded BatchNorm bias (+ conv bias)
    if relu:
        y = jnp.maximum(y, 0.0)                     # ReLU
    o_ref[0] = y.reshape(tile_h, wo, cout).astype(o_ref.dtype)


# ----------------------------------------------------------------------------
# Wrapper helpers
# ----------------------------------------------------------------------------
def _vmem_limit_bytes():
    """Chip-aware scoped-VMEM limit (review: raise on v5e/v6e, stay safe on v7x)."""
    try:
        cap = pltpu.get_tpu_info().vmem_capacity_bytes
    except Exception:
        cap = 64 * 1024 * 1024
    return max(32 * 1024 * 1024, min(cap // 2, 96 * 1024 * 1024))


def _pick_tile_h(ho, wo, cout, *, m_target=512, acc_budget=256 * 1024):
    """Row-tile height: multiple of 8, M = tile_h*wo near m_target, f32 acc within budget."""
    t = max(8, ((m_target // max(wo, 1)) // 8) * 8)
    while t > 8 and t * wo * cout * 4 > acc_budget:
        t -= 8
    t = min(t, ((ho + 7) // 8) * 8)                 # never much taller than the output
    return max(t, 8)


# ----------------------------------------------------------------------------
# BNConv.forward: Conv2d(bias) -> BatchNorm2d(eval) -> ReLU.  NCHW in / NCHW out.
# ----------------------------------------------------------------------------
def bnconv_forward(x_nchw, weight_oihw, conv_bias=None, bn_stats=None, relu=True, *,
                   stride=1, padding=0, dilation=1, groups=1, eps=1e-5,
                   out_dtype=jnp.float32):
    if stride != 1 or dilation != 1 or groups != 1:
        # TODO(synk): strided / dilated / grouped convolutions are not lowered to the
        # Pallas kernel; only stride=1, dilation=1, groups=1 is implemented.
        raise NotImplementedError("only stride=1, dilation=1, groups=1 is supported")

    n, cin, h, w = x_nchw.shape
    cout, cin_w, kh, kw = weight_oihw.shape
    assert cin_w == cin, (cin_w, cin)
    hp, wp = h + 2 * padding, w + 2 * padding
    ho, wo = hp - kh + 1, wp - kw + 1
    assert ho > 0 and wo > 0, (ho, wo)
    k_dim = kh * kw * cin

    tile_h = _pick_tile_h(ho, wo, cout)
    n_row_tiles = -(-ho // tile_h)                  # cdiv; no divisor requirement on Ho
    ho_pad = n_row_tiles * tile_h
    hp_pad = ho_pad + kh - 1

    # Prologue: bf16 first (halves the bytes the transpose/pad copies move), then
    # NCHW -> NHWC (channels on lanes) and spatial zero-pad (+ extra bottom rows so the
    # padded output-row range is fully computable and later sliced off).
    # TODO(synk): accepting/emitting NHWC directly would remove these full-tensor HBM ops.
    x = jnp.transpose(x_nchw.astype(jnp.bfloat16), (0, 2, 3, 1))          # (N, H, W, Cin)
    xp = jnp.pad(x, ((0, 0),
                     (padding, padding + (hp_pad - hp)),
                     (padding, padding),
                     (0, 0)))                                             # (N, Hp_pad, Wp, Cin)

    # Fold BatchNorm (inference running stats) into scale/bias; scale goes INTO the weights.
    # TODO(synk): training-mode BatchNorm (batch statistics + running-stat updates) is not
    # computed inside the kernel; inference semantics only.
    if bn_stats is not None:
        gamma, beta, mean, var = bn_stats
        s = gamma / jnp.sqrt(var + eps)
        b = beta - mean * s
    else:
        s = jnp.ones((cout,), jnp.float32)
        b = jnp.zeros((cout,), jnp.float32)
    if conv_bias is not None:
        b = b + s * conv_bias

    # OIHW -> (KH, KW, Cin, Cout) -> (KH*KW*Cin, Cout); order matches the kernel tap loop.
    w2d = jnp.transpose(weight_oihw, (2, 3, 1, 0)).reshape(k_dim, cout)
    w2d = (w2d * s[None, :]).astype(jnp.bfloat16)          # BN scale folded (review item 4)
    bias = b.reshape(1, cout).astype(jnp.float32)

    kernel = functools.partial(_bnconv_kernel, kh_size=kh, kw_size=kw,
                               tile_h=tile_h, wo=wo, cin=cin, relu=bool(relu))

    out = pl.pallas_call(
        kernel,
        out_shape=jax.ShapeDtypeStruct((n, ho_pad, wo, cout), out_dtype),
        grid=(n, n_row_tiles),
        in_specs=[
            # Whole padded image; block index constant along the row-tile axis so it is
            # DMA'd once per batch element and revisited from VMEM across row tiles.
            # TODO(synk): for large images on v7x (64 MiB VMEM) switch this to manual
            # row-band DMA (memory_space=pl.ANY + make_async_copy) or fewer buffers.
            pl.BlockSpec((1, hp_pad, wp, cin), lambda i, j: (i, 0, 0, 0)),
            pl.BlockSpec((k_dim, cout), lambda i, j: (0, 0)),      # folded weights
            pl.BlockSpec((1, cout), lambda i, j: (0, 0)),          # folded bias
        ],
        out_specs=pl.BlockSpec((1, tile_h, wo, cout), lambda i, j: (i, j, 0, 0)),
        compiler_params=pltpu.CompilerParams(
            dimension_semantics=("parallel", "parallel"),
            vmem_limit_bytes=_vmem_limit_bytes()),
    )(xp, w2d, bias)

    out = out[:, :ho]                                       # drop padded output rows
    return jnp.transpose(out, (0, 3, 1, 2))                 # NHWC -> NCHW


# ----------------------------------------------------------------------------
# Pure-JAX reference (correctness check only)
# ----------------------------------------------------------------------------
def reference_forward(x_nchw, w_oihw, conv_bias, bn_stats, relu, *, padding, eps=1e-5):
    y = lax.conv_general_dilated(
        x_nchw, w_oihw, window_strides=(1, 1),
        padding=((padding, padding), (padding, padding)),
        dimension_numbers=("NCHW", "OIHW", "NCHW"),
        precision=lax.Precision.HIGHEST)
    if conv_bias is not None:
        y = y + conv_bias.reshape(1, -1, 1, 1)
    if bn_stats is not None:
        gamma, beta, mean, var = bn_stats
        inv = gamma / jnp.sqrt(var + eps)
        y = (y - mean.reshape(1, -1, 1, 1)) * inv.reshape(1, -1, 1, 1) + beta.reshape(1, -1, 1, 1)
    if relu:
        y = jnp.maximum(y, 0.0)
    return y


if __name__ == "__main__":
    key = jax.random.PRNGKey(0)
    k1, k2, k3, k4, k5, k6, k7, k8 = jax.random.split(key, 8)

    # Config 1: BNConv(16, 32, kernel_size=3, padding=1), defaults (bn=True, relu=True, bias=False)
    N, Cin, H, W, Cout, K, pad = 2, 16, 16, 16, 32, 3, 1
    x = jax.random.normal(k1, (N, Cin, H, W), jnp.float32)
    wgt = jax.random.normal(k2, (Cout, Cin, K, K), jnp.float32) / jnp.sqrt(Cin * K * K)
    gamma = 1.0 + 0.1 * jax.random.normal(k3, (Cout,), jnp.float32)
    beta = 0.1 * jax.random.normal(k4, (Cout,), jnp.float32)
    run_mean = 0.1 * jax.random.normal(k5, (Cout,), jnp.float32)
    run_var = 1.0 + 0.1 * jax.random.uniform(k6, (Cout,), jnp.float32)
    bn = (gamma, beta, run_mean, run_var)

    out = jax.block_until_ready(
        bnconv_forward(x, wgt, conv_bias=None, bn_stats=bn, relu=True, padding=pad))
    ref = jax.block_until_ready(
        reference_forward(x, wgt, None, bn, True, padding=pad))
    assert out.shape == ref.shape == (N, Cout, H, W), out.shape
    err = float(jnp.max(jnp.abs(out - ref)))
    tol = 2e-2 * (1.0 + float(jnp.max(jnp.abs(ref))))       # bf16-operand tolerance
    assert err <= tol, (err, tol)

    # Config 2: bn=False, relu=False, bias=True, odd height (exercises row-tile padding)
    N2, Ci2, H2, W2, Co2 = 1, 8, 10, 16, 16
    x2 = jax.random.normal(k7, (N2, Ci2, H2, W2), jnp.float32)
    w2 = jax.random.normal(k8, (Co2, Ci2, K, K), jnp.float32) / jnp.sqrt(Ci2 * K * K)
    b2 = 0.1 * jax.random.normal(k3, (Co2,), jnp.float32)
    out2 = jax.block_until_ready(
        bnconv_forward(x2, w2, conv_bias=b2, bn_stats=None, relu=False, padding=1))
    ref2 = jax.block_until_ready(
        reference_forward(x2, w2, b2, None, False, padding=1))
    assert out2.shape == ref2.shape == (N2, Co2, H2, W2), out2.shape
    err2 = float(jnp.max(jnp.abs(out2 - ref2)))
    tol2 = 2e-2 * (1.0 + float(jnp.max(jnp.abs(ref2))))
    assert err2 <= tol2, (err2, tol2)

    print("KERNEL_OK")
</pallas_src>

<mosaic_0001>
module attributes {stable_mosaic.version = 11 : i64} {
  func.func @_bnconv_kernel(%arg0: i32, %arg1: i32, %arg2: memref<1x18x18x16xbf16, #tpu.memory_space<vmem>>, %arg3: memref<144x32xbf16, #tpu.memory_space<vmem>>, %arg4: memref<1x32xf32, #tpu.memory_space<vmem>>, %arg5: memref<1x16x16x32xf32, #tpu.memory_space<vmem>>) attributes {dimension_semantics = [#tpu.dimension_semantics<parallel>, #tpu.dimension_semantics<parallel>], iteration_bounds = array<i64: 2, 1>, scalar_prefetch = 0 : i64, scratch_operands = 0 : i64, tpu.core_type = #tpu.core_type<tc>, window_params = [{transform_indices = @transform_0, window_bounds = array<i64: 1, 18, 18, 16>}, {pipeline_mode = #tpu.pipeline_mode<synchronous>, transform_indices = @transform_1, window_bounds = array<i64: 144, 32>}, {pipeline_mode = #tpu.pipeline_mode<synchronous>, transform_indices = @transform_2, window_bounds = array<i64: 1, 32>}, {transform_indices = @transform_3, window_bounds = array<i64: 1, 16, 16, 32>}]} {
    %c16_i32 = arith.constant 16 : i32
    %0 = arith.muli %arg1, %c16_i32 : i32
    %1 = tpu.assume_multiple %0, 16 : i32
    %c0 = arith.constant 0 : index
    %2 = arith.index_cast %1 : i32 to index
    %c0_0 = arith.constant 0 : index
    %c0_1 = arith.constant 0 : index
    %3 = vector.load %arg2[%c0, %2, %c0_0, %c0_1] : memref<1x18x18x16xbf16, #tpu.memory_space<vmem>>, vector<1x18x18x16xbf16>
    %4 = vector.shape_cast %3 : vector<1x18x18x16xbf16> to vector<18x18x16xbf16>
    %cst = arith.constant 0.000000e+00 : f32
    %5 = vector.broadcast %cst : f32 to vector<256x32xf32>
    %6 = vector.extract_strided_slice %4 {offsets = [0, 0, 0], sizes = [16, 18, 16], strides = [1, 1, 1]} : vector<18x18x16xbf16> to vector<16x18x16xbf16>
    %7 = vector.extract_strided_slice %6 {offsets = [0, 0, 0], sizes = [16, 16, 16], strides = [1, 1, 1]} : vector<16x18x16xbf16> to vector<16x16x16xbf16>
    %8 = vector.shape_cast %7 : vector<16x16x16xbf16> to vector<256x16xbf16>
    %c0_2 = arith.constant 0 : index
    %c0_3 = arith.constant 0 : index
    %9 = vector.load %arg3[%c0_2, %c0_3] : memref<144x32xbf16, #tpu.memory_space<vmem>>, vector<16x32xbf16>
    %cst_4 = arith.constant dense<0.000000e+00> : vector<256x32xf32>
    %10 = tpu.matmul %8, %9, %cst_4 {dimension_numbers = #tpu.dot_dimension_numbers<[1], [0], [0], [1], [0, 0, 1, 1], [], []>} : vector<256x16xbf16>, vector<16x32xbf16>, vector<256x32xf32> -> vector<256x32xf32>
    %11 = arith.addf %5, %10 : vector<256x32xf32>
    %12 = vector.extract_strided_slice %6 {offsets = [0, 1, 0], sizes = [16, 16, 16], strides = [1, 1, 1]} : vector<16x18x16xbf16> to vector<16x16x16xbf16>
    %13 = vector.shape_cast %12 : vector<16x16x16xbf16> to vector<256x16xbf16>
    %c16 = arith.constant 16 : index
    %c0_5 = arith.constant 0 : index
    %14 = vector.load %arg3[%c16, %c0_5] : memref<144x32xbf16, #tpu.memory_space<vmem>>, vector<16x32xbf16>
    %cst_6 = arith.constant dense<0.000000e+00> : vector<256x32xf32>
    %15 = tpu.matmul %13, %14, %cst_6 {dimension_numbers = #tpu.dot_dimension_numbers<[1], [0], [0], [1], [0, 0, 1, 1], [], []>} : vector<256x16xbf16>, vector<16x32xbf16>, vector<256x32xf32> -> vector<256x32xf32>
    %16 = arith.addf %11, %15 : vector<256x32xf32>
    %17 = vector.extract_strided_slice %6 {offsets = [0, 2, 0], sizes = [16, 16, 16], strides = [1, 1, 1]} : vector<16x18x16xbf16> to vector<16x16x16xbf16>
    %18 = vector.shape_cast %17 : vector<16x16x16xbf16> to vector<256x16xbf16>
    %c32 = arith.constant 32 : index
    %c0_7 = arith.constant 0 : index
    %19 = vector.load %arg3[%c32, %c0_7] : memref<144x32xbf16, #tpu.memory_space<vmem>>, vector<16x32xbf16>
    %cst_8 = arith.constant dense<0.000000e+00> : vector<256x32xf32>
    %20 = tpu.matmul %18, %19, %cst_8 {dimension_numbers = #tpu.dot_dimension_numbers<[1], [0], [0], [1], [0, 0, 1, 1], [], []>} : vector<256x16xbf16>, vector<16x32xbf16>, vector<256x32xf32> -> vector<256x32xf32>
    %21 = arith.addf %16, %20 : vector<256x32xf32>
    %22 = vector.extract_strided_slice %4 {offsets = [1, 0, 0], sizes = [16, 18, 16], strides = [1, 1, 1]} : vector<18x18x16xbf16> to vector<16x18x16xbf16>
    %23 = vector.extract_strided_slice %22 {offsets = [0, 0, 0], sizes = [16, 16, 16], strides = [1, 1, 1]} : vector<16x18x16xbf16> to vector<16x16x16xbf16>
    %24 = vector.shape_cast %23 : vector<16x16x16xbf16> to vector<256x16xbf16>
    %c48 = arith.constant 48 : index
    %c0_9 = arith.constant 0 : index
    %25 = vector.load %arg3[%c48, %c0_9] : memref<144x32xbf16, #tpu.memory_space<vmem>>, vector<16x32xbf16>
    %cst_10 = arith.constant dense<0.000000e+00> : vector<256x32xf32>
    %26 = tpu.matmul %24, %25, %cst_10 {dimension_numbers = #tpu.dot_dimension_numbers<[1], [0], [0], [1], [0, 0, 1, 1], [], []>} : vector<256x16xbf16>, vector<16x32xbf16>, vector<256x32xf32> -> vector<256x32xf32>
    %27 = arith.addf %21, %26 : vector<256x32xf32>
    %28 = vector.extract_strided_slice %22 {offsets = [0, 1, 0], sizes = [16, 16, 16], strides = [1, 1, 1]} : vector<16x18x16xbf16> to vector<16x16x16xbf16>
    %29 = vector.shape_cast %28 : vector<16x16x16xbf16> to vector<256x16xbf16>
    %c64 = arith.constant 64 : index
    %c0_11 = arith.constant 0 : index
    %30 = vector.load %arg3[%c64, %c0_11] : memref<144x32xbf16, #tpu.memory_space<vmem>>, vector<16x32xbf16>
    %cst_12 = arith.constant dense<0.000000e+00> : vector<256x32xf32>
    %31 = tpu.matmul %29, %30, %cst_12 {dimension_numbers = #tpu.dot_dimension_numbers<[1], [0], [0], [1], [0, 0, 1, 1], [], []>} : vector<256x16xbf16>, vector<16x32xbf16>, vector<256x32xf32> -> vector<256x32xf32>
    %32 = arith.addf %27, %31 : vector<256x32xf32>
    %33 = vector.extract_strided_slice %22 {offsets = [0, 2, 0], sizes = [16, 16, 16], strides = [1, 1, 1]} : vector<16x18x16xbf16> to vector<16x16x16xbf16>
    %34 = vector.shape_cast %33 : vector<16x16x16xbf16> to vector<256x16xbf16>
    %c80 = arith.constant 80 : index
    %c0_13 = arith.constant 0 : index
    %35 = vector.load %arg3[%c80, %c0_13] : memref<144x32xbf16, #tpu.memory_space<vmem>>, vector<16x32xbf16>
    %cst_14 = arith.constant dense<0.000000e+00> : vector<256x32xf32>
    %36 = tpu.matmul %34, %35, %cst_14 {dimension_numbers = #tpu.dot_dimension_numbers<[1], [0], [0], [1], [0, 0, 1, 1], [], []>} : vector<256x16xbf16>, vector<16x32xbf16>, vector<256x32xf32> -> vector<256x32xf32>
    %37 = arith.addf %32, %36 : vector<256x32xf32>
    %38 = vector.extract_strided_slice %4 {offsets = [2, 0, 0], sizes = [16, 18, 16], strides = [1, 1, 1]} : vector<18x18x16xbf16> to vector<16x18x16xbf16>
    %39 = vector.extract_strided_slice %38 {offsets = [0, 0, 0], sizes = [16, 16, 16], strides = [1, 1, 1]} : vector<16x18x16xbf16> to vector<16x16x16xbf16>
    %40 = vector.shape_cast %39 : vector<16x16x16xbf16> to vector<256x16xbf16>
    %c96 = arith.constant 96 : index
    %c0_15 = arith.constant 0 : index
    %41 = vector.load %arg3[%c96, %c0_15] : memref<144x32xbf16, #tpu.memory_space<vmem>>, vector<16x32xbf16>
    %cst_16 = arith.constant dense<0.000000e+00> : vector<256x32xf32>
    %42 = tpu.matmul %40, %41, %cst_16 {dimension_numbers = #tpu.dot_dimension_numbers<[1], [0], [0], [1], [0, 0, 1, 1], [], []>} : vector<256x16xbf16>, vector<16x32xbf16>, vector<256x32xf32> -> vector<256x32xf32>
    %43 = arith.addf %37, %42 : vector<256x32xf32>
    %44 = vector.extract_strided_slice %38 {offsets = [0, 1, 0], sizes = [16, 16, 16], strides = [1, 1, 1]} : vector<16x18x16xbf16> to vector<16x16x16xbf16>
    %45 = vector.shape_cast %44 : vector<16x16x16xbf16> to vector<256x16xbf16>
    %c112 = arith.constant 112 : index
    %c0_17 = arith.constant 0 : index
    %46 = vector.load %arg3[%c112, %c0_17] : memref<144x32xbf16, #tpu.memory_space<vmem>>, vector<16x32xbf16>
    %cst_18 = arith.constant dense<0.000000e+00> : vector<256x32xf32>
    %47 = tpu.matmul %45, %46, %cst_18 {dimension_numbers = #tpu.dot_dimension_numbers<[1], [0], [0], [1], [0, 0, 1, 1], [], []>} : vector<256x16xbf16>, vector<16x32xbf16>, vector<256x32xf32> -> vector<256x32xf32>
    %48 = arith.addf %43, %47 : vector<256x32xf32>
    %49 = vector.extract_strided_slice %38 {offsets = [0, 2, 0], sizes = [16, 16, 16], strides = [1, 1, 1]} : vector<16x18x16xbf16> to vector<16x16x16xbf16>
    %50 = vector.shape_cast %49 : vector<16x16x16xbf16> to vector<256x16xbf16>
    %c128 = arith.constant 128 : index
    %c0_19 = arith.constant 0 : index
    %51 = vector.load %arg3[%c128, %c0_19] : memref<144x32xbf16, #tpu.memory_space<vmem>>, vector<16x32xbf16>
    %cst_20 = arith.constant dense<0.000000e+00> : vector<256x32xf32>
    %52 = tpu.matmul %50, %51, %cst_20 {dimension_numbers = #tpu.dot_dimension_numbers<[1], [0], [0], [1], [0, 0, 1, 1], [], []>} : vector<256x16xbf16>, vector<16x32xbf16>, vector<256x32xf32> -> vector<256x32xf32>
    %53 = arith.addf %48, %52 : vector<256x32xf32>
    %c0_21 = arith.constant 0 : index
    %c0_22 = arith.constant 0 : index
    %54 = vector.load %arg4[%c0_21, %c0_22] : memref<1x32xf32, #tpu.memory_space<vmem>>, vector<1x32xf32>
    %55 = vector.broadcast %54 : vector<1x32xf32> to vector<256x32xf32>
    %56 = arith.addf %53, %55 : vector<256x32xf32>
    %cst_23 = arith.constant 0.000000e+00 : f32
    %57 = vector.broadcast %cst_23 : f32 to vector<256x32xf32>
    %58 = arith.maximumf %56, %57 : vector<256x32xf32>
    %59 = vector.shape_cast %58 : vector<256x32xf32> to vector<16x16x32xf32>
    %c0_24 = arith.constant 0 : index
    %c0_25 = arith.constant 0 : index
    %c0_26 = arith.constant 0 : index
    %c0_27 = arith.constant 0 : index
    %60 = vector.load %arg5[%c0_24, %c0_25, %c0_26, %c0_27] : memref<1x16x16x32xf32, #tpu.memory_space<vmem>>, vector<1x16x16x32xf32>
    %61 = vector.shape_cast %60 : vector<1x16x16x32xf32> to vector<16x16x32xf32>
    %62 = vector.shape_cast %59 : vector<16x16x32xf32> to vector<1x16x16x32xf32>
    tpu.vector_store %arg5[%c0_24, %c0_25, %c0_26, %c0_27], %62 {strides = array<i32>} : memref<1x16x16x32xf32, #tpu.memory_space<vmem>>, vector<1x16x16x32xf32>,
    return
  }
  func.func @transform_0(%arg0: i32, %arg1: i32) -> (i32, i32, i32, i32) {
    %c0_i32 = arith.constant 0 : i32
    %c0_i32_0 = arith.constant 0 : i32
    %c0_i32_1 = arith.constant 0 : i32
    %c0_i32_2 = arith.constant 0 : i32
    return %arg0, %c0_i32, %c0_i32_0, %c0_i32_1 : i32, i32, i32, i32
  }
  func.func @transform_1(%arg0: i32, %arg1: i32) -> (i32, i32) {
    %c0_i32 = arith.constant 0 : i32
    %c0_i32_0 = arith.constant 0 : i32
    %c0_i32_1 = arith.constant 0 : i32
    return %c0_i32, %c0_i32_0 : i32, i32
  }
  func.func @transform_2(%arg0: i32, %arg1: i32) -> (i32, i32) {
    %c0_i32 = arith.constant 0 : i32
    %c0_i32_0 = arith.constant 0 : i32
    %c0_i32_1 = arith.constant 0 : i32
    return %c0_i32, %c0_i32_0 : i32, i32
  }
  func.func @transform_3(%arg0: i32, %arg1: i32) -> (i32, i32, i32, i32) {
    %c0_i32 = arith.constant 0 : i32
    %c0_i32_0 = arith.constant 0 : i32
    %c0_i32_1 = arith.constant 0 : i32
    return %arg0, %arg1, %c0_i32, %c0_i32_0 : i32, i32, i32, i32
  }
}

</mosaic_0001>

<llo_original>
// kernel: tpu_custom_call.1
$region0: #{tpu_custom_call.1}
  #allocation0 [shape = 'u32[]', space=smem, size = 0x4, offset = 0x4, fixed_abs, tag = 'smem constant byte address 0x4 - core index']
  #allocation1 [shape = 'u32[144,128]{1,0:T(1,128)}', space=vmem, size = 0x12000, scoped, tag = 'internal scratch']
  %s0 = inlined_call_operand.vmem [shape: bf16[2,18,18,16], index: 0, kind: input, shape index: {}]
  %s1 = inlined_call_operand.vmem [shape: bf16[144,32], index: 1, kind: input, shape index: {}]
  %s2 = inlined_call_operand.vmem [shape: f32[1,32], index: 2, kind: input, shape index: {}]
  %s3 = inlined_call_operand.hbm [shape: f32[2,16,16,32], index: 3, kind: output, shape index: {}]
  %s4 = sld [smem:[#allocation0]]
  $region45: #{tpu_custom_call.1} parent=0
    _
  %s6 = ssub.s32 1, %s4
  %s7 = scalar_select 0, %s6, %s4
  $region1: #{tpu_custom_call.1} parent=0
    #allocation2 [shape = 'u8[262144]{0}', space=vmem, size = 0x40000, scoped, tag = 'output window, operand 0']
    #allocation3 [shape = 's32[2]{0}', space=sflag, size = 0x8, scoped, tag = 'scoped memory for tpu_custom_call.1']
    %8 = vsyncpa [#allocation3], 0
    %s9 = scalar_lea.sflag [#allocation3], 1
    %10 = vsyncpa %s9, 0
    loop: start=0, step=1, limit=4
    $region2: #{tpu_custom_call.1} parent=1 // loop_pre_header
      _
    $region3: #{tpu_custom_call.1} parent=1 // loop_header
      %s12 = sphi 0, %s16
      %p13 = scmp.ge.s32.totalorder %s12, 4
      %s19 = sphi 0, %s31
      %s20 = sphi 0, %s27
      %s21 = sphi 0, %s19
      %s22 = sphi 0, %s20
      %s23 = sphi 0, %s21
      %s24 = sphi 0, %s22
      %s34 = sphi 0, %s36
      %s37 = sphi 0, %s34
      %s38 = sphi 0, %s37
      %s54 = sphi 0, %s38
      %s58 = sphi 0, %s58
      %s60 = sphi 0, %s58
      %s61 = sphi 0, %s60
      %s75 = sphi 0, %s61
      %s79 = sphi 0, %s79
      %s81 = sphi 0, %s79
      %s82 = sphi 0, %s81
      %s96 = sphi 0, %s82
      %s104 = sphi 0, %s106
      %s107 = sphi 0, %s104
      %s108 = sphi 0, %s107
      %s124 = sphi 0, %s108
    $region4: #{tpu_custom_call.1} parent=1 // loop_header_branch
      %15 = sbr.rel (%p13) target = $region8
    $region5: #{tpu_custom_call.1} parent=1 // loop_body
      %s17 = ssub.s32 %s12, 1
      %s18 = ssub.s32 %s12, 2
      %s25 = sadd.s32 1, %s20
      %p26 = scmp.ge.s32.totalorder %s25, 1
      %s27 = scalar_select %p26, 0, %s25
      %s28 = sadd.s32 1, %s19
      %s29 = scalar_select %p26, %s28, %s19
      %p30 = scmp.ge.s32.totalorder %s29, 2
      %s31 = scalar_select %p30, 0, %s29
      %s32 = ssub.s32 %s19, %s31
      %p33 = scmp.eq.s32.totalorder %s32, 0
      %s35 = sadd.s32 %s34, 1
      %s36 = scalar_select %p33, %s34, %s35
      %p39 = pneg %p33
      %p40 = scmp.eq.s32.totalorder %s12, 1
      %p41 = por %p39, %p40
      %p42 = scmp.ne.s32.totalorder %s34, %s37
      %p43 = scmp.eq.s32.totalorder %s12, 0
      %p44 = por %p42, %p43
      %p45 = scmp.ne.s32.totalorder %s34, %s37
      %p46 = scmp.eq.s32.totalorder %s17, 1
      %p47 = por %p45, %p46
      %p48 = scmp.ne.s32.totalorder %s37, %s38
      %p49 = scmp.eq.s32.totalorder %s17, 0
      %p50 = por %p48, %p49
      %p51 = scmp.ne.s32.totalorder %s37, %s38
      %p52 = scmp.eq.s32.totalorder %s18, 1
      %p53 = por %p51, %p52
      %p55 = scmp.ne.s32.totalorder %s38, %s54
      %p56 = scmp.eq.s32.totalorder %s18, 0
      %p57 = por %p55, %p56
      %s59 = sadd.s32 %s58, 1
      %p62 = scmp.eq.s32.totalorder %s12, 1
      %p63 = scmp.ne.s32.totalorder %s58, %s60
      %p64 = scmp.eq.s32.totalorder %s12, 0
      %p65 = por %p63, %p64
      %p66 = scmp.ne.s32.totalorder %s58, %s60
      %p67 = scmp.eq.s32.totalorder %s17, 1
      %p68 = por %p66, %p67
      %p69 = scmp.ne.s32.totalorder %s60, %s61
      %p70 = scmp.eq.s32.totalorder %s17, 0
      %p71 = por %p69, %p70
      %p72 = scmp.ne.s32.totalorder %s60, %s61
      %p73 = scmp.eq.s32.totalorder %s18, 1
      %p74 = por %p72, %p73
      %p76 = scmp.ne.s32.totalorder %s61, %s75
      %p77 = scmp.eq.s32.totalorder %s18, 0
      %p78 = por %p76, %p77
      %s80 = sadd.s32 %s79, 1
      %p83 = scmp.eq.s32.totalorder %s12, 1
      %p84 = scmp.ne.s32.totalorder %s79, %s81
      %p85 = scmp.eq.s32.totalorder %s12, 0
      %p86 = por %p84, %p85
      %p87 = scmp.ne.s32.totalorder %s79, %s81
      %p88 = scmp.eq.s32.totalorder %s17, 1
      %p89 = por %p87, %p88
      %p90 = scmp.ne.s32.totalorder %s81, %s82
      %p91 = scmp.eq.s32.totalorder %s17, 0
      %p92 = por %p90, %p91
      %p93 = scmp.ne.s32.totalorder %s81, %s82
      %p94 = scmp.eq.s32.totalorder %s18, 1
      %p95 = por %p93, %p94
      %p97 = scmp.ne.s32.totalorder %s82, %s96
      %p98 = scmp.eq.s32.totalorder %s18, 0
      %p99 = por %p97, %p98
      %s100 = ssub.s32 %s19, %s31
      %s101 = ssub.s32 %s20, %s27
      %s102 = sor.u32 %s100, %s101
      %p103 = scmp.eq.s32.totalorder %s102, 0
      %s105 = sadd.s32 %s104, 1
      %s106 = scalar_select %p103, %s104, %s105
      %p109 = pneg %p103
      %p110 = scmp.eq.s32.totalorder %s12, 1
      %p111 = por %p109, %p110
      %p112 = scmp.ne.s32.totalorder %s104, %s107
      %p113 = scmp.eq.s32.totalorder %s12, 0
      %p114 = por %p112, %p113
      %p115 = scmp.ne.s32.totalorder %s104, %s107
      %p116 = scmp.eq.s32.totalorder %s17, 1
      %p117 = por %p115, %p116
      %p118 = scmp.ne.s32.totalorder %s107, %s108
      %p119 = scmp.eq.s32.totalorder %s17, 0
      %p120 = por %p118, %p119
      %p121 = scmp.ne.s32.totalorder %s107, %s108
      %p122 = scmp.eq.s32.totalorder %s18, 1
      %p123 = por %p121, %p122
      %p125 = scmp.ne.s32.totalorder %s108, %s124
      %p126 = scmp.eq.s32.totalorder %s18, 0
      %p127 = por %p125, %p126
      %p128 = scmp.le.s32.totalorder 1, %s12
      %p129 = scmp.lt.s32.totalorder %s12, 3
      %p130 = pnand %p128, %p129
      %p131 = pneg %p130
      // Predicated region
      $region9: #{tpu_custom_call.1} parent=5 // pred_check
        _
      $region10: #{tpu_custom_call.1} parent=5 // pred_check_branch
        %133 = sbr.rel (%p130) target = $region12
      $region11: #{tpu_custom_call.1} parent=5 // pred_region
        %s134 = ssub.s32 %s12, 1
        // Predicated region
        $region13: #{tpu_custom_call.1} parent=11 // pred_check
          %p135 = pneg %p71
        $region14: #{tpu_custom_call.1} parent=11 // pred_check_branch
          %137 = sbr.rel (%p135) target = $region16
        $region15: #{tpu_custom_call.1} parent=11 // pred_region
          _
        $region16: #{tpu_custom_call.1} parent=11 // pred_fallthru
          _
        // Predicated region
        $region17: #{tpu_custom_call.1} parent=11 // pred_check
          %p138 = pneg %p92
        $region18: #{tpu_custom_call.1} parent=11 // pred_check_branch
          %140 = sbr.rel (%p138) target = $region20
        $region19: #{tpu_custom_call.1} parent=11 // pred_region
          _
        $region20: #{tpu_custom_call.1} parent=11 // pred_fallthru
          _
      $region12: #{tpu_custom_call.1} parent=5 // pred_fallthru
        _
      %p141 = scmp.lt.s32.totalorder %s12, 2
      // Predicated region
      $region21: #{tpu_custom_call.1} parent=5 // pred_check
        %p142 = pneg %p141
      $region22: #{tpu_custom_call.1} parent=5 // pred_check_branch
        %144 = sbr.rel (%p142) target = $region24
      $region23: #{tpu_custom_call.1} parent=5 // pred_region
        // Predicated region
        $region25: #{tpu_custom_call.1} parent=23 // pred_check
          %p145 = pneg %p44
        $region26: #{tpu_custom_call.1} parent=23 // pred_check_branch
          %147 = sbr.rel (%p145) target = $region28
        $region27: #{tpu_custom_call.1} parent=23 // pred_region
          %p148 = scmp.lt.s32.totalorder %s19, 1
          %s149 = scalar_select %p148, %s19, 1
          %s150 = smul.addr %s149, 54
          %s151 = smul.addr %s150, 4
          %s152 = scalar_lea.vmem %s0, %s151
        $region28: #{tpu_custom_call.1} parent=23 // pred_fallthru
          _
      $region24: #{tpu_custom_call.1} parent=5 // pred_fallthru
        _
      %p153 = scmp.le.s32.totalorder 1, %s12
      %p154 = scmp.lt.s32.totalorder %s12, 3
      %p155 = pnand %p153, %p154
      %p156 = pneg %p155
      // Predicated region
      $region29: #{tpu_custom_call.1} parent=5 // pred_check
        _
      $region30: #{tpu_custom_call.1} parent=5 // pred_check_branch
        %158 = sbr.rel (%p155) target = $region32
      $region31: #{tpu_custom_call.1} parent=5 // pred_region
        %s159 = ssub.s32 %s12, 1
        %p160 = scmp.lt.s32.totalorder %s21, 1
        %s161 = scalar_select %p160, %s21, 1
        %s162 = smul.addr %s161, 54
        %s163 = smul.addr %s162, 4
        %s164 = scalar_lea.vmem %s0, %s163
        %p165 = pneg %p50
        %p166 = pneg %p47
        %p167 = pneg %p71
        %p168 = pneg %p68
        %p169 = pneg %p92
        %p170 = pneg %p89
        %p171 = pneg %p120
        %p172 = pneg %p117
        %s173 = sand.u32 %s107, 1
        %s174 = scalar_lea.sflag [#allocation3], %s173
        %s175 = sand.u32 %s107, 1
        %s176 = smul.addr %s175, 256
        %s177 = scalar_lea.vmem [#allocation2], %s176
        %p178 = scmp.lt.s32.totalorder %s21, 1
        %s179 = scalar_select %p178, %s21, 1
        %s180 = smul.addr %s179, 54
        %s181 = smul.addr %s180, 4
        %s182 = scalar_lea.vmem %s0, %s181
        %s183 = smul.u32 16, %s22
        %s185 = smul.u32 %s22, 16
        %s186 = smul.u32 %s185, 3
        %s187 = smul.addr %s186, 4
        %s188 = scalar_lea.vmem %s182, %s187
        %v189 = vld [vmem:[%s188] sm:$0xf]
        %v190 = vld [vmem:[%s188 + $0x4] sm:$0xf]
        %v191 = vld [vmem:[%s188 + $0x8] sm:$0x1]
        %v192 = vld [vmem:[%s188 + $0xc] sm:$0xf]
        %v193 = vld [vmem:[%s188 + $0x10] sm:$0xf]
        %v194 = vld [vmem:[%s188 + $0x14] sm:$0x1]
        %v195 = vld [vmem:[%s188 + $0x18] sm:$0xf]
        %v196 = vld [vmem:[%s188 + $0x1c] sm:$0xf]
        %v197 = vld [vmem:[%s188 + $0x20] sm:$0x1]
        %v198 = vld [vmem:[%s188 + $0x24] sm:$0xf]
        %v199 = vld [vmem:[%s188 + $0x28] sm:$0xf]
        %v200 = vld [vmem:[%s188 + $0x2c] sm:$0x1]
        %v201 = vld [vmem:[%s188 + $0x30] sm:$0xf]
        %v202 = vld [vmem:[%s188 + $0x34] sm:$0xf]
        %v203 = vld [vmem:[%s188 + $0x38] sm:$0x1]
        %v204 = vld [vmem:[%s188 + $0x3c] sm:$0xf]
        %v205 = vld [vmem:[%s188 + $0x40] sm:$0xf]
        %v206 = vld [vmem:[%s188 + $0x44] sm:$0x1]
        %v207 = vld [vmem:[%s188 + $0x48] sm:$0xf]
        %v208 = vld [vmem:[%s188 + $0x4c] sm:$0xf]
        %v209 = vld [vmem:[%s188 + $0x50] sm:$0x1]
        %v210 = vld [vmem:[%s188 + $0x54] sm:$0xf]
        %v211 = vld [vmem:[%s188 + $0x58] sm:$0xf]
        %v212 = vld [vmem:[%s188 + $0x5c] sm:$0x1]
        %v213 = vld [vmem:[%s188 + $0x60] sm:$0xf]
        %v214 = vld [vmem:[%s188 + $0x64] sm:$0xf]
        %v215 = vld [vmem:[%s188 + $0x68] sm:$0x1]
        %v216 = vld [vmem:[%s188 + $0x6c] sm:$0xf]
        %v217 = vld [vmem:[%s188 + $0x70] sm:$0xf]
        %v218 = vld [vmem:[%s188 + $0x74] sm:$0x1]
        %v219 = vld [vmem:[%s188 + $0x78] sm:$0xf]
        %v220 = vld [vmem:[%s188 + $0x7c] sm:$0xf]
        %v221 = vld [vmem:[%s188 + $0x80] sm:$0x1]
        %v222 = vld [vmem:[%s188 + $0x84] sm:$0xf]
        %v223 = vld [vmem:[%s188 + $0x88] sm:$0xf]
        %v224 = vld [vmem:[%s188 + $0x8c] sm:$0x1]
        %v225 = vld [vmem:[%s188 + $0x90] sm:$0xf]
        %v226 = vld [vmem:[%s188 + $0x94] sm:$0xf]
        %v227 = vld [vmem:[%s188 + $0x98] sm:$0x1]
        %v228 = vld [vmem:[%s188 + $0x9c] sm:$0xf]
        %v229 = vld [vmem:[%s188 + $0xa0] sm:$0xf]
        %v230 = vld [vmem:[%s188 + $0xa4] sm:$0x1]
        %v231 = vld [vmem:[%s188 + $0xa8] sm:$0xf]
        %v232 = vld [vmem:[%s188 + $0xac] sm:$0xf]
        %v233 = vld [vmem:[%s188 + $0xb0] sm:$0x1]
        %v234 = vld [vmem:[%s188 + $0xb4] sm:$0xf]
        %v235 = vld [vmem:[%s188 + $0xb8] sm:$0xf]
        %v236 = vld [vmem:[%s188 + $0xbc] sm:$0x1]
        %v237 = vld [vmem:[%s188 + $0xc0] sm:$0xf]
        %v238 = vld [vmem:[%s188 + $0xc4] sm:$0xf]
        %v239 = vld [vmem:[%s188 + $0xc8] sm:$0x1]
        %v240 = vld [vmem:[%s188 + $0xcc] sm:$0xf]
        %v241 = vld [vmem:[%s188 + $0xd0] sm:$0xf]
        %v242 = vld [vmem:[%s188 + $0xd4] sm:$0x1]
        %v243 = vld [vmem:[%s1] sm:$0xf]
        %v244 = vld [vmem:[%s1 + $0x4] sm:$0xf]
        %vm245 = vsmask.f32 3328
        %vm246 = vsmask.f32 7440
        %vm247 = vmor %vm245, %vm246
        %v249 = vshrl.u32 %v189, 16
        %v251 = vrot.slane %v249, 4
        %v252 = vshll.u32 %v189, 16
        %v254 = vrot.slane %v252, 5
        %v255 = vor.u32 %v251, %v254
        %v256 = vrot.slane %v255, 4
        %v258 = vshll.u32 %v190, 16
        %v260 = vrot.slane %v258, 5
        %v261 = vsel %vm247, %v256, %v260
        %v262 = vshrl.u32 %v190, 16
        %v264 = vrot.slane %v262, 4
        %v265 = vor.u32 %v264, %v260
        %v266 = vrot.slane %v265, 4
        %v268 = vshll.u32 %v191, 16
        %v270 = vrot.slane %v268, 5
        %v271 = vsel %vm247, %v266, %v270
        %v273 = vshrl.u32 %v192, 16
        %v275 = vrot.slane %v273, 4
        %v276 = vshll.u32 %v192, 16
        %v278 = vrot.slane %v276, 5
        %v279 = vor.u32 %v275, %v278
        %v280 = vrot.slane %v279, 4
        %v282 = vshll.u32 %v193, 16
        %v284 = vrot.slane %v282, 5
        %v285 = vsel %vm247, %v280, %v284
        %v286 = vshrl.u32 %v193, 16
        %v288 = vrot.slane %v286, 4
        %v289 = vor.u32 %v288, %v284
        %v290 = vrot.slane %v289, 4
        %v292 = vshll.u32 %v194, 16
        %v294 = vrot.slane %v292, 5
        %v295 = vsel %vm247, %v290, %v294
        %v297 = vshrl.u32 %v195, 16
        %v299 = vrot.slane %v297, 4
        %v300 = vshll.u32 %v195, 16
        %v302 = vrot.slane %v300, 5
        %v303 = vor.u32 %v299, %v302
        %v304 = vrot.slane %v303, 4
        %v306 = vshll.u32 %v196, 16
        %v308 = vrot.slane %v306, 5
        %v309 = vsel %vm247, %v304, %v308
        %v310 = vshrl.u32 %v196, 16
        %v312 = vrot.slane %v310, 4
        %v313 = vor.u32 %v312, %v308
        %v314 = vrot.slane %v313, 4
        %v316 = vshll.u32 %v197, 16
        %v318 = vrot.slane %v316, 5
        %v319 = vsel %vm247, %v314, %v318
        %v321 = vshrl.u32 %v198, 16
        %v323 = vrot.slane %v321, 4
        %v324 = vshll.u32 %v198, 16
        %v326 = vrot.slane %v324, 5
        %v327 = vor.u32 %v323, %v326
        %v328 = vrot.slane %v327, 4
        %v330 = vshll.u32 %v199, 16
        %v332 = vrot.slane %v330, 5
        %v333 = vsel %vm247, %v328, %v332
        %v334 = vshrl.u32 %v199, 16
        %v336 = vrot.slane %v334, 4
        %v337 = vor.u32 %v336, %v332
        %v338 = vrot.slane %v337, 4
        %v340 = vshll.u32 %v200, 16
        %v342 = vrot.slane %v340, 5
        %v343 = vsel %vm247, %v338, %v342
        %v345 = vshrl.u32 %v201, 16
        %v347 = vrot.slane %v345, 4
        %v348 = vshll.u32 %v201, 16
        %v350 = vrot.slane %v348, 5
        %v351 = vor.u32 %v347, %v350
        %v352 = vrot.slane %v351, 4
        %v354 = vshll.u32 %v202, 16
        %v356 = vrot.slane %v354, 5
        %v357 = vsel %vm247, %v352, %v356
        %v358 = vshrl.u32 %v202, 16
        %v360 = vrot.slane %v358, 4
        %v361 = vor.u32 %v360, %v356
        %v362 = vrot.slane %v361, 4
        %v364 = vshll.u32 %v203, 16
        %v366 = vrot.slane %v364, 5
        %v367 = vsel %vm247, %v362, %v366
        %v369 = vshrl.u32 %v204, 16
        %v371 = vrot.slane %v369, 4
        %v372 = vshll.u32 %v204, 16
        %v374 = vrot.slane %v372, 5
        %v375 = vor.u32 %v371, %v374
        %v376 = vrot.slane %v375, 4
        %v378 = vshll.u32 %v205, 16
        %v380 = vrot.slane %v378, 5
        %v381 = vsel %vm247, %v376, %v380
        %v382 = vshrl.u32 %v205, 16
        %v384 = vrot.slane %v382, 4
        %v385 = vor.u32 %v384, %v380
        %v386 = vrot.slane %v385, 4
        %v388 = vshll.u32 %v206, 16
        %v390 = vrot.slane %v388, 5
        %v391 = vsel %vm247, %v386, %v390
        %v393 = vshrl.u32 %v207, 16
        %v395 = vrot.slane %v393, 4
        %v396 = vshll.u32 %v207, 16
        %v398 = vrot.slane %v396, 5
        %v399 = vor.u32 %v395, %v398
        %v400 = vrot.slane %v399, 4
        %v402 = vshll.u32 %v208, 16
        %v404 = vrot.slane %v402, 5
        %v405 = vsel %vm247, %v400, %v404
        %v406 = vshrl.u32 %v208, 16
        %v408 = vrot.slane %v406, 4
        %v409 = vor.u32 %v408, %v404
        %v410 = vrot.slane %v409, 4
        %v412 = vshll.u32 %v209, 16
        %v414 = vrot.slane %v412, 5
        %v415 = vsel %vm247, %v410, %v414
        %v417 = vshrl.u32 %v210, 16
        %v419 = vrot.slane %v417, 4
        %v420 = vshll.u32 %v210, 16
        %v422 = vrot.slane %v420, 5
        %v423 = vor.u32 %v419, %v422
        %v424 = vrot.slane %v423, 4
        %v426 = vshll.u32 %v211, 16
        %v428 = vrot.slane %v426, 5
        %v429 = vsel %vm247, %v424, %v428
        %v430 = vshrl.u32 %v211, 16
        %v432 = vrot.slane %v430, 4
        %v433 = vor.u32 %v432, %v428
        %v434 = vrot.slane %v433, 4
        %v436 = vshll.u32 %v212, 16
        %v438 = vrot.slane %v436, 5
        %v439 = vsel %vm247, %v434, %v438
        %v441 = vshrl.u32 %v213, 16
        %v443 = vrot.slane %v441, 4
        %v444 = vshll.u32 %v213, 16
        %v446 = vrot.slane %v444, 5
        %v447 = vor.u32 %v443, %v446
        %v448 = vrot.slane %v447, 4
        %v450 = vshll.u32 %v214, 16
        %v452 = vrot.slane %v450, 5
        %v453 = vsel %vm247, %v448, %v452
        %v454 = vshrl.u32 %v214, 16
        %v456 = vrot.slane %v454, 4
        %v457 = vor.u32 %v456, %v452
        %v458 = vrot.slane %v457, 4
        %v460 = vshll.u32 %v215, 16
        %v462 = vrot.slane %v460, 5
        %v463 = vsel %vm247, %v458, %v462
        %v465 = vshrl.u32 %v216, 16
        %v467 = vrot.slane %v465, 4
        %v468 = vshll.u32 %v216, 16
        %v470 = vrot.slane %v468, 5
        %v471 = vor.u32 %v467, %v470
        %v472 = vrot.slane %v471, 4
        %v474 = vshll.u32 %v217, 16
        %v476 = vrot.slane %v474, 5
        %v477 = vsel %vm247, %v472, %v476
        %v478 = vshrl.u32 %v217, 16
        %v480 = vrot.slane %v478, 4
        %v481 = vor.u32 %v480, %v476
        %v482 = vrot.slane %v481, 4
        %v484 = vshll.u32 %v218, 16
        %v486 = vrot.slane %v484, 5
        %v487 = vsel %vm247, %v482, %v486
        %v489 = vshrl.u32 %v219, 16
        %v491 = vrot.slane %v489, 4
        %v492 = vshll.u32 %v219, 16
        %v494 = vrot.slane %v492, 5
        %v495 = vor.u32 %v491, %v494
        %v496 = vrot.slane %v495, 4
        %v498 = vshll.u32 %v220, 16
        %v500 = vrot.slane %v498, 5
        %v501 = vsel %vm247, %v496, %v500
        %v502 = vshrl.u32 %v220, 16
        %v504 = vrot.slane %v502, 4
        %v505 = vor.u32 %v504, %v500
        %v506 = vrot.slane %v505, 4
        %v508 = vshll.u32 %v221, 16
        %v510 = vrot.slane %v508, 5
        %v511 = vsel %vm247, %v506, %v510
        %v513 = vshrl.u32 %v222, 16
        %v515 = vrot.slane %v513, 4
        %v516 = vshll.u32 %v222, 16
        %v518 = vrot.slane %v516, 5
        %v519 = vor.u32 %v515, %v518
        %v520 = vrot.slane %v519, 4
        %v522 = vshll.u32 %v223, 16
        %v524 = vrot.slane %v522, 5
        %v525 = vsel %vm247, %v520, %v524
        %v526 = vshrl.u32 %v223, 16
        %v528 = vrot.slane %v526, 4
        %v529 = vor.u32 %v528, %v524
        %v530 = vrot.slane %v529, 4
        %v532 = vshll.u32 %v224, 16
        %v534 = vrot.slane %v532, 5
        %v535 = vsel %vm247, %v530, %v534
        %v537 = vshrl.u32 %v225, 16
        %v539 = vrot.slane %v537, 4
        %v540 = vshll.u32 %v225, 16
        %v542 = vrot.slane %v540, 5
        %v543 = vor.u32 %v539, %v542
        %v544 = vrot.slane %v543, 4
        %v546 = vshll.u32 %v226, 16
        %v548 = vrot.slane %v546, 5
        %v549 = vsel %vm247, %v544, %v548
        %v550 = vshrl.u32 %v226, 16
        %v552 = vrot.slane %v550, 4
        %v553 = vor.u32 %v552, %v548
        %v554 = vrot.slane %v553, 4
        %v556 = vshll.u32 %v227, 16
        %v558 = vrot.slane %v556, 5
        %v559 = vsel %vm247, %v554, %v558
        %v561 = vshrl.u32 %v228, 16
        %v563 = vrot.slane %v561, 4
        %v564 = vshll.u32 %v228, 16
        %v566 = vrot.slane %v564, 5
        %v567 = vor.u32 %v563, %v566
        %v568 = vrot.slane %v567, 4
        %v570 = vshll.u32 %v229, 16
        %v572 = vrot.slane %v570, 5
        %v573 = vsel %vm247, %v568, %v572
        %v574 = vshrl.u32 %v229, 16
        %v576 = vrot.slane %v574, 4
        %v577 = vor.u32 %v576, %v572
        %v578 = vrot.slane %v577, 4
        %v580 = vshll.u32 %v230, 16
        %v582 = vrot.slane %v580, 5
        %v583 = vsel %vm247, %v578, %v582
        %v585 = vshrl.u32 %v231, 16
        %v587 = vrot.slane %v585, 4
        %v588 = vshll.u32 %v231, 16
        %v590 = vrot.slane %v588, 5
        %v591 = vor.u32 %v587, %v590
        %v592 = vrot.slane %v591, 4
        %v594 = vshll.u32 %v232, 16
        %v596 = vrot.slane %v594, 5
        %v597 = vsel %vm247, %v592, %v596
        %v598 = vshrl.u32 %v232, 16
        %v600 = vrot.slane %v598, 4
        %v601 = vor.u32 %v600, %v596
        %v602 = vrot.slane %v601, 4
        %v604 = vshll.u32 %v233, 16
        %v606 = vrot.slane %v604, 5
        %v607 = vsel %vm247, %v602, %v606
        %v609 = vshrl.u32 %v234, 16
        %v611 = vrot.slane %v609, 4
        %v612 = vshll.u32 %v234, 16
        %v614 = vrot.slane %v612, 5
        %v615 = vor.u32 %v611, %v614
        %v616 = vrot.slane %v615, 4
        %v618 = vshll.u32 %v235, 16
        %v620 = vrot.slane %v618, 5
        %v621 = vsel %vm247, %v616, %v620
        %v622 = vshrl.u32 %v235, 16
        %v624 = vrot.slane %v622, 4
        %v625 = vor.u32 %v624, %v620
        %v626 = vrot.slane %v625, 4
        %v628 = vshll.u32 %v236, 16
        %v630 = vrot.slane %v628, 5
        %v631 = vsel %vm247, %v626, %v630
        %v632 = vld [vmem:[%s1 + $0x8] sm:$0xf]
        %v633 = vld [vmem:[%s1 + $0xc] sm:$0xf]
        %v634 = vunpack.c.l.b16 %v261
        %v635 = vunpack.c.l.b16 %v271
        %v636 = vunpack.c.l.b16 %v285
        %v637 = vunpack.c.l.b16 %v295
        %v638 = vunpack.c.l.b16 %v309
        %v639 = vunpack.c.l.b16 %v319
        %v640 = vunpack.c.l.b16 %v333
        %v641 = vunpack.c.l.b16 %v343
        %v642 = vunpack.c.l.b16 %v357
        %v643 = vunpack.c.l.b16 %v367
        %v644 = vunpack.c.l.b16 %v381
        %v645 = vunpack.c.l.b16 %v391
        %v646 = vunpack.c.l.b16 %v405
        %v647 = vunpack.c.l.b16 %v415
        %v648 = vunpack.c.l.b16 %v429
        %v649 = vunpack.c.l.b16 %v439
        %v650 = vunpack.c.l.b16 %v453
        %v651 = vunpack.c.l.b16 %v463
        %v652 = vunpack.c.l.b16 %v477
        %v653 = vunpack.c.l.b16 %v487
        %v654 = vunpack.c.l.b16 %v501
        %v655 = vunpack.c.l.b16 %v511
        %v656 = vunpack.c.l.b16 %v525
        %v657 = vunpack.c.l.b16 %v535
        %v658 = vunpack.c.l.b16 %v549
        %v659 = vunpack.c.l.b16 %v559
        %v660 = vunpack.c.l.b16 %v573
        %v661 = vunpack.c.l.b16 %v583
        %v662 = vunpack.c.l.b16 %v597
        %v663 = vunpack.c.l.b16 %v607
        %v664 = vunpack.c.l.b16 %v621
        %v665 = vunpack.c.l.b16 %v631
        %v666 = vpack.c.b16 %v635, %v634
        %v667 = vpack.c.b16 %v637, %v636
        %v668 = vpack.c.b16 %v639, %v638
        %v669 = vpack.c.b16 %v641, %v640
        %v670 = vpack.c.b16 %v643, %v642
        %v671 = vpack.c.b16 %v645, %v644
        %v672 = vpack.c.b16 %v647, %v646
        %v673 = vpack.c.b16 %v649, %v648
        %v674 = vpack.c.b16 %v651, %v650
        %v675 = vpack.c.b16 %v653, %v652
        %v676 = vpack.c.b16 %v655, %v654
        %v677 = vpack.c.b16 %v657, %v656
        %v678 = vpack.c.b16 %v659, %v658
        %v679 = vpack.c.b16 %v661, %v660
        %v680 = vpack.c.b16 %v663, %v662
        %v681 = vpack.c.b16 %v665, %v664
        %v684 = vunpack.c.l.b16 %v632
        %v685 = vunpack.c.l.b16 %v633
        %v686 = vpack.c.b16 %v685, %v684
        %vm688 = vcmask 130048
        %v690 = vsel %vm688, %v666, 0
        %v693 = vsel %vm688, %v667, 0
        %v696 = vsel %vm688, %v668, 0
        %v699 = vsel %vm688, %v669, 0
        %v702 = vsel %vm688, %v670, 0
        %v705 = vsel %vm688, %v671, 0
        %v708 = vsel %vm688, %v672, 0
        %v711 = vsel %vm688, %v673, 0
        %v714 = vsel %vm688, %v674, 0
        %v717 = vsel %vm688, %v675, 0
        %v720 = vsel %vm688, %v676, 0
        %v723 = vsel %vm688, %v677, 0
        %v726 = vsel %vm688, %v678, 0
        %v729 = vsel %vm688, %v679, 0
        %v732 = vsel %vm688, %v680, 0
        %v735 = vsel %vm688, %v681, 0
        %737 = vmatprep.subr.bf16.mxu0 0
        %738 = vmatpush1.bf16.msra.mxu0 %v686
        %739 = vmatprep.subr.bf16.mxu0 0
        %740 = vmatpush1.bf16.msra.mxu0 0
        %741 = vmatprep.subr.bf16.mxu0 0
        %742 = vmatpush1.bf16.msra.mxu0 0
        %743 = vmatprep.subr.bf16.mxu0 0
        %744 = vmatpush1.bf16.msra.mxu0 0
        %745 = vmatprep.subr.bf16.mxu0 0
        %746 = vmatpush1.bf16.msra.mxu0 0
        %747 = vmatprep.subr.bf16.mxu0 0
        %748 = vmatpush1.bf16.msra.mxu0 0
        %749 = vmatprep.subr.bf16.mxu0 0
        %750 = vmatpush1.bf16.msra.mxu0 0
        %751 = vmatprep.subr.bf16.mxu0 0
        %752 = vmatpush1.bf16.msra.mxu0 0
        %753 = vmatprep.subr.bf16.mxu0 0
        %754 = vmatpush1.bf16.msra.mxu0 0
        %755 = vmatprep.subr.bf16.mxu0 0
        %756 = vmatpush1.bf16.msra.mxu0 0
        %757 = vmatprep.subr.bf16.mxu0 0
        %758 = vmatpush1.bf16.msra.mxu0 0
        %759 = vmatprep.subr.bf16.mxu0 0
        %760 = vmatpush1.bf16.msra.mxu0 0
        %761 = vmatprep.subr.bf16.mxu0 0
        %762 = vmatpush1.bf16.msra.mxu0 0
        %763 = vmatprep.subr.bf16.mxu0 0
        %764 = vmatpush1.bf16.msra.mxu0 0
        %765 = vmatprep.subr.bf16.mxu0 0
        %766 = vmatpush1.bf16.msra.mxu0 0
        %767 = vmatprep.subr.bf16.mxu0 0
        %768 = vmatpush1.bf16.msra.mxu0 0
        %769 = vmatprep.mubr.bf16.mxu0 0
        %770 = vmatmul.mubr.bf16.gmra.mrb[0].mxu0 %v690
        %v771 = vpop.f32.mrb[0].mxu0
        %v772 = vadd.f32 0.0, %v771
        %v773 = vpop.f32.mrb[0].mxu0
        %v774 = vpop.f32.mrb[0].mxu0
        %v775 = vadd.f32 0.0, %v774
        %v776 = vpop.f32.mrb[0].mxu0
        %777 = vmatprep.mubr.bf16.mxu0 0
        %778 = vmatmul.mubr.bf16.gmra.mrb[0].mxu0 %v693
        %v779 = vpop.f32.mrb[0].mxu0
        %v780 = vadd.f32 0.0, %v779
        %v781 = vpop.f32.mrb[0].mxu0
        %v782 = vpop.f32.mrb[0].mxu0
        %v783 = vadd.f32 0.0, %v782
        %v784 = vpop.f32.mrb[0].mxu0
        %785 = vmatprep.mubr.bf16.mxu0 0
        %786 = vmatmul.mubr.bf16.gmra.mrb[0].mxu0 %v696
        %v787 = vpop.f32.mrb[0].mxu0
        %v788 = vadd.f32 0.0, %v787
        %v789 = vpop.f32.mrb[0].mxu0
        %v790 = vpop.f32.mrb[0].mxu0
        %v791 = vadd.f32 0.0, %v790
        %v792 = vpop.f32.mrb[0].mxu0
        %793 = vmatprep.mubr.bf16.mxu0 0
        %794 = vmatmul.mubr.bf16.gmra.mrb[0].mxu0 %v699
        %v795 = vpop.f32.mrb[0].mxu0
        %v796 = vadd.f32 0.0, %v795
        %v797 = vpop.f32.mrb[0].mxu0
        %v798 = vpop.f32.mrb[0].mxu0
        %v799 = vadd.f32 0.0, %v798
        %v800 = vpop.f32.mrb[0].mxu0
        %801 = vmatprep.mubr.bf16.mxu0 0
        %802 = vmatmul.mubr.bf16.gmra.mrb[0].mxu0 %v702
        %v803 = vpop.f32.mrb[0].mxu0
        %v804 = vadd.f32 0.0, %v803
        %v805 = vpop.f32.mrb[0].mxu0
        %v806 = vpop.f32.mrb[0].mxu0
        %v807 = vadd.f32 0.0, %v806
        %v808 = vpop.f32.mrb[0].mxu0
        %809 = vmatprep.mubr.bf16.mxu0 0
        %810 = vmatmul.mubr.bf16.gmra.mrb[0].mxu0 %v705
        %v811 = vpop.f32.mrb[0].mxu0
        %v812 = vadd.f32 0.0, %v811
        %v813 = vpop.f32.mrb[0].mxu0
        %v814 = vpop.f32.mrb[0].mxu0
        %v815 = vadd.f32 0.0, %v814
        %v816 = vpop.f32.mrb[0].mxu0
        %817 = vmatprep.mubr.bf16.mxu0 0
        %818 = vmatmul.mubr.bf16.gmra.mrb[0].mxu0 %v708
        %v819 = vpop.f32.mrb[0].mxu0
        %v820 = vadd.f32 0.0, %v819
        %v821 = vpop.f32.mrb[0].mxu0
        %v822 = vpop.f32.mrb[0].mxu0
        %v823 = vadd.f32 0.0, %v822
        %v824 = vpop.f32.mrb[0].mxu0
        %825 = vmatprep.mubr.bf16.mxu0 0
        %826 = vmatmul.mubr.bf16.gmra.mrb[0].mxu0 %v711
        %v827 = vpop.f32.mrb[0].mxu0
        %v828 = vadd.f32 0.0, %v827
        %v829 = vpop.f32.mrb[0].mxu0
        %v830 = vpop.f32.mrb[0].mxu0
        %v831 = vadd.f32 0.0, %v830
        %v832 = vpop.f32.mrb[0].mxu0
        %833 = vmatprep.mubr.bf16.mxu0 0
        %834 = vmatmul.mubr.bf16.gmra.mrb[0].mxu0 %v714
        %v835 = vpop.f32.mrb[0].mxu0
        %v836 = vadd.f32 0.0, %v835
        %v837 = vpop.f32.mrb[0].mxu0
        %v838 = vpop.f32.mrb[0].mxu0
        %v839 = vadd.f32 0.0, %v838
        %v840 = vpop.f32.mrb[0].mxu0
        %841 = vmatprep.mubr.bf16.mxu0 0
        %842 = vmatmul.mubr.bf16.gmra.mrb[0].mxu0 %v717
        %v843 = vpop.f32.mrb[0].mxu0
        %v844 = vadd.f32 0.0, %v843
        %v845 = vpop.f32.mrb[0].mxu0
        %v846 = vpop.f32.mrb[0].mxu0
        %v847 = vadd.f32 0.0, %v846
        %v848 = vpop.f32.mrb[0].mxu0
        %849 = vmatprep.mubr.bf16.mxu0 0
        %850 = vmatmul.mubr.bf16.gmra.mrb[0].mxu0 %v720
        %v851 = vpop.f32.mrb[0].mxu0
        %v852 = vadd.f32 0.0, %v851
        %v853 = vpop.f32.mrb[0].mxu0
        %v854 = vpop.f32.mrb[0].mxu0
        %v855 = vadd.f32 0.0, %v854
        %v856 = vpop.f32.mrb[0].mxu0
        %857 = vmatprep.mubr.bf16.mxu0 0
        %858 = vmatmul.mubr.bf16.gmra.mrb[0].mxu0 %v723
        %v859 = vpop.f32.mrb[0].mxu0
        %v860 = vadd.f32 0.0, %v859
        %v861 = vpop.f32.mrb[0].mxu0
        %v862 = vpop.f32.mrb[0].mxu0
        %v863 = vadd.f32 0.0, %v862
        %v864 = vpop.f32.mrb[0].mxu0
        %865 = vmatprep.mubr.bf16.mxu0 0
        %866 = vmatmul.mubr.bf16.gmra.mrb[0].mxu0 %v726
        %v867 = vpop.f32.mrb[0].mxu0
        %v868 = vadd.f32 0.0, %v867
        %v869 = vpop.f32.mrb[0].mxu0
        %v870 = vpop.f32.mrb[0].mxu0
        %v871 = vadd.f32 0.0, %v870
        %v872 = vpop.f32.mrb[0].mxu0
        %873 = vmatprep.mubr.bf16.mxu0 0
        %874 = vmatmul.mubr.bf16.gmra.mrb[0].mxu0 %v729
        %v875 = vpop.f32.mrb[0].mxu0
        %v876 = vadd.f32 0.0, %v875
        %v877 = vpop.f32.mrb[0].mxu0
        %v878 = vpop.f32.mrb[0].mxu0
        %v879 = vadd.f32 0.0, %v878
        %v880 = vpop.f32.mrb[0].mxu0
        %881 = vmatprep.mubr.bf16.mxu0 0
        %882 = vmatmul.mubr.bf16.gmra.mrb[0].mxu0 %v732
        %v883 = vpop.f32.mrb[0].mxu0
        %v884 = vadd.f32 0.0, %v883
        %v885 = vpop.f32.mrb[0].mxu0
        %v886 = vpop.f32.mrb[0].mxu0
        %v887 = vadd.f32 0.0, %v886
        %v888 = vpop.f32.mrb[0].mxu0
        %889 = vmatprep.mubr.bf16.mxu0 0
        %890 = vmatmul.mubr.bf16.gmra.mrb[0].mxu0 %v735
        %v891 = vpop.f32.mrb[0].mxu0
        %v892 = vadd.f32 0.0, %v891
        %v893 = vpop.f32.mrb[0].mxu0
        %v894 = vpop.f32.mrb[0].mxu0
        %v895 = vadd.f32 0.0, %v894
        %v896 = vpop.f32.mrb[0].mxu0
        %897 = vdwg.mxu0
        %v930 = vunpack.c.l.b16 %v189
        %v931 = vunpack.c.l.b16 %v190
        %v932 = vunpack.c.l.b16 %v192
        %v933 = vunpack.c.l.b16 %v193
        %v934 = vunpack.c.l.b16 %v195
        %v935 = vunpack.c.l.b16 %v196
        %v936 = vunpack.c.l.b16 %v198
        %v937 = vunpack.c.l.b16 %v199
        %v938 = vunpack.c.l.b16 %v201
        %v939 = vunpack.c.l.b16 %v202
        %v940 = vunpack.c.l.b16 %v204
        %v941 = vunpack.c.l.b16 %v205
        %v942 = vunpack.c.l.b16 %v207
        %v943 = vunpack.c.l.b16 %v208
        %v944 = vunpack.c.l.b16 %v210
        %v945 = vunpack.c.l.b16 %v211
        %v946 = vunpack.c.l.b16 %v213
        %v947 = vunpack.c.l.b16 %v214
        %v948 = vunpack.c.l.b16 %v216
        %v949 = vunpack.c.l.b16 %v217
        %v950 = vunpack.c.l.b16 %v219
        %v951 = vunpack.c.l.b16 %v220
        %v952 = vunpack.c.l.b16 %v222
        %v953 = vunpack.c.l.b16 %v223
        %v954 = vunpack.c.l.b16 %v225
        %v955 = vunpack.c.l.b16 %v226
        %v956 = vunpack.c.l.b16 %v228
        %v957 = vunpack.c.l.b16 %v229
        %v958 = vunpack.c.l.b16 %v231
        %v959 = vunpack.c.l.b16 %v232
        %v960 = vunpack.c.l.b16 %v234
        %v961 = vunpack.c.l.b16 %v235
        %v962 = vpack.c.b16 %v931, %v930
        %v963 = vpack.c.b16 %v933, %v932
        %v964 = vpack.c.b16 %v935, %v934
        %v965 = vpack.c.b16 %v937, %v936
        %v966 = vpack.c.b16 %v939, %v938
        %v967 = vpack.c.b16 %v941, %v940
        %v968 = vpack.c.b16 %v943, %v942
        %v969 = vpack.c.b16 %v945, %v944
        %v970 = vpack.c.b16 %v947, %v946
        %v971 = vpack.c.b16 %v949, %v948
        %v972 = vpack.c.b16 %v951, %v950
        %v973 = vpack.c.b16 %v953, %v952
        %v974 = vpack.c.b16 %v955, %v954
        %v975 = vpack.c.b16 %v957, %v956
        %v976 = vpack.c.b16 %v959, %v958
        %v977 = vpack.c.b16 %v961, %v960
        %v980 = vunpack.c.l.b16 %v243
        %v981 = vunpack.c.l.b16 %v244
        %v982 = vpack.c.b16 %v981, %v980
        %v985 = vsel %vm688, %v962, 0
        %v988 = vsel %vm688, %v963, 0
        %v991 = vsel %vm688, %v964, 0
        %v994 = vsel %vm688, %v965, 0
        %v997 = vsel %vm688, %v966, 0
        %v1000 = vsel %vm688, %v967, 0
        %v1003 = vsel %vm688, %v968, 0
        %v1006 = vsel %vm688, %v969, 0
        %v1009 = vsel %vm688, %v970, 0
        %v1012 = vsel %vm688, %v971, 0
        %v1015 = vsel %vm688, %v972, 0
        %v1018 = vsel %vm688, %v973, 0
        %v1021 = vsel %vm688, %v974, 0
        %v1024 = vsel %vm688, %v975, 0
        %v1027 = vsel %vm688, %v976, 0
        %v1030 = vsel %vm688, %v977, 0
        %1032 = vmatprep.subr.bf16.mxu0 0
        %1033 = vmatpush1.bf16.msra.mxu0 %v982
        %1034 = vmatprep.subr.bf16.mxu0 0
        %1035 = vmatpush1.bf16.msra.mxu0 0
        %1036 = vmatprep.subr.bf16.mxu0 0
        %1037 = vmatpush1.bf16.msra.mxu0 0
        %1038 = vmatprep.subr.bf16.mxu0 0
        %1039 = vmatpush1.bf16.msra.mxu0 0
        %1040 = vmatprep.subr.bf16.mxu0 0
        %1041 = vmatpush1.bf16.msra.mxu0 0
        %1042 = vmatprep.subr.bf16.mxu0 0
        %1043 = vmatpush1.bf16.msra.mxu0 0
        %1044 = vmatprep.subr.bf16.mxu0 0
        %1045 = vmatpush1.bf16.msra.mxu0 0
        %1046 = vmatprep.subr.bf16.mxu0 0
        %1047 = vmatpush1.bf16.msra.mxu0 0
        %1048 = vmatprep.subr.bf16.mxu0 0
        %1049 = vmatpush1.bf16.msra.mxu0 0
        %1050 = vmatprep.subr.bf16.mxu0 0
        %1051 = vmatpush1.bf16.msra.mxu0 0
        %1052 = vmatprep.subr.bf16.mxu0 0
        %1053 = vmatpush1.bf16.msra.mxu0 0
        %1054 = vmatprep.subr.bf16.mxu0 0
        %1055 = vmatpush1.bf16.msra.mxu0 0
        %1056 = vmatprep.subr.bf16.mxu0 0
        %1057 = vmatpush1.bf16.msra.mxu0 0
        %1058 = vmatprep.subr.bf16.mxu0 0
        %1059 = vmatpush1.bf16.msra.mxu0 0
        %1060 = vmatprep.subr.bf16.mxu0 0
        %1061 = vmatpush1.bf16.msra.mxu0 0
        %1062 = vmatprep.subr.bf16.mxu0 0
        %1063 = vmatpush1.bf16.msra.mxu0 0
        %1064 = vmatprep.mubr.bf16.mxu0 0
        %1065 = vmatmul.mubr.bf16.gmra.mrb[0].mxu0 %v985
        %v1066 = vpop.f32.mrb[0].mxu0
        %v1067 = vadd.f32 %v772, %v1066
        %v1068 = vpop.f32.mrb[0].mxu0
        %v1069 = vpop.f32.mrb[0].mxu0
        %v1070 = vadd.f32 %v775, %v1069
        %v1071 = vpop.f32.mrb[0].mxu0
        %1072 = vmatprep.mubr.bf16.mxu0 0
        %1073 = vmatmul.mubr.bf16.gmra.mrb[0].mxu0 %v988
        %v1074 = vpop.f32.mrb[0].mxu0
        %v1075 = vadd.f32 %v780, %v1074
        %v1076 = vpop.f32.mrb[0].mxu0
        %v1077 = vpop.f32.mrb[0].mxu0
        %v1078 = vadd.f32 %v783, %v1077
        %v1079 = vpop.f32.mrb[0].mxu0
        %1080 = vmatprep.mubr.bf16.mxu0 0
        %1081 = vmatmul.mubr.bf16.gmra.mrb[0].mxu0 %v991
        %v1082 = vpop.f32.mrb[0].mxu0
        %v1083 = vadd.f32 %v788, %v1082
        %v1084 = vpop.f32.mrb[0].mxu0
        %v1085 = vpop.f32.mrb[0].mxu0
        %v1086 = vadd.f32 %v791, %v1085
        %v1087 = vpop.f32.mrb[0].mxu0
        %1088 = vmatprep.mubr.bf16.mxu0 0
        %1089 = vmatmul.mubr.bf16.gmra.mrb[0].mxu0 %v994
        %v1090 = vpop.f32.mrb[0].mxu0
        %v1091 = vadd.f32 %v796, %v1090
        %v1092 = vpop.f32.mrb[0].mxu0
        %v1093 = vpop.f32.mrb[0].mxu0
        %v1094 = vadd.f32 %v799, %v1093
        %v1095 = vpop.f32.mrb[0].mxu0
        %1096 = vmatprep.mubr.bf16.mxu0 0
        %1097 = vmatmul.mubr.bf16.gmra.mrb[0].mxu0 %v997
        %v1098 = vpop.f32.mrb[0].mxu0
        %v1099 = vadd.f32 %v804, %v1098
        %v1100 = vpop.f32.mrb[0].mxu0
        %v1101 = vpop.f32.mrb[0].mxu0
        %v1102 = vadd.f32 %v807, %v1101
        %v1103 = vpop.f32.mrb[0].mxu0
        %1104 = vmatprep.mubr.bf16.mxu0 0
        %1105 = vmatmul.mubr.bf16.gmra.mrb[0].mxu0 %v1000
        %v1106 = vpop.f32.mrb[0].mxu0
        %v1107 = vadd.f32 %v812, %v1106
        %v1108 = vpop.f32.mrb[0].mxu0
        %v1109 = vpop.f32.mrb[0].mxu0
        %v1110 = vadd.f32 %v815, %v1109
        %v1111 = vpop.f32.mrb[0].mxu0
        %1112 = vmatprep.mubr.bf16.mxu0 0
        %1113 = vmatmul.mubr.bf16.gmra.mrb[0].mxu0 %v1003
        %v1114 = vpop.f32.mrb[0].mxu0
        %v1115 = vadd.f32 %v820, %v1114
        %v1116 = vpop.f32.mrb[0].mxu0
        %v1117 = vpop.f32.mrb[0].mxu0
        %v1118 = vadd.f32 %v823, %v1117
        %v1119 = vpop.f32.mrb[0].mxu0
        %1120 = vmatprep.mubr.bf16.mxu0 0
        %1121 = vmatmul.mubr.bf16.gmra.mrb[0].mxu0 %v1006
        %v1122 = vpop.f32.mrb[0].mxu0
        %v1123 = vadd.f32 %v828, %v1122
        %v1124 = vpop.f32.mrb[0].mxu0
        %v1125 = vpop.f32.mrb[0].mxu0
        %v1126 = vadd.f32 %v831, %v1125
        %v1127 = vpop.f32.mrb[0].mxu0
        %1128 = vmatprep.mubr.bf16.mxu0 0
        %1129 = vmatmul.mubr.bf16.gmra.mrb[0].mxu0 %v1009
        %v1130 = vpop.f32.mrb[0].mxu0
        %v1131 = vadd.f32 %v836, %v1130
        %v1132 = vpop.f32.mrb[0].mxu0
        %v1133 = vpop.f32.mrb[0].mxu0
        %v1134 = vadd.f32 %v839, %v1133
        %v1135 = vpop.f32.mrb[0].mxu0
        %1136 = vmatprep.mubr.bf16.mxu0 0
        %1137 = vmatmul.mubr.bf16.gmra.mrb[0].mxu0 %v1012
        %v1138 = vpop.f32.mrb[0].mxu0
        %v1139 = vadd.f32 %v844, %v1138
        %v1140 = vpop.f32.mrb[0].mxu0
        %v1141 = vpop.f32.mrb[0].mxu0
        %v1142 = vadd.f32 %v847, %v1141
        %v1143 = vpop.f32.mrb[0].mxu0
        %1144 = vmatprep.mubr.bf16.mxu0 0
        %1145 = vmatmul.mubr.bf16.gmra.mrb[0].mxu0 %v1015
        %v1146 = vpop.f32.mrb[0].mxu0
        %v1147 = vadd.f32 %v852, %v1146
        %v1148 = vpop.f32.mrb[0].mxu0
        %v1149 = vpop.f32.mrb[0].mxu0
        %v1150 = vadd.f32 %v855, %v1149
        %v1151 = vpop.f32.mrb[0].mxu0
        %1152 = vmatprep.mubr.bf16.mxu0 0
        %1153 = vmatmul.mubr.bf16.gmra.mrb[0].mxu0 %v1018
        %v1154 = vpop.f32.mrb[0].mxu0
        %v1155 = vadd.f32 %v860, %v1154
        %v1156 = vpop.f32.mrb[0].mxu0
        %v1157 = vpop.f32.mrb[0].mxu0
        %v1158 = vadd.f32 %v863, %v1157
        %v1159 = vpop.f32.mrb[0].mxu0
        %1160 = vmatprep.mubr.bf16.mxu0 0
        %1161 = vmatmul.mubr.bf16.gmra.mrb[0].mxu0 %v1021
        %v1162 = vpop.f32.mrb[0].mxu0
        %v1163 = vadd.f32 %v868, %v1162
        %v1164 = vpop.f32.mrb[0].mxu0
        %v1165 = vpop.f32.mrb[0].mxu0
        %v1166 = vadd.f32 %v871, %v1165
        %v1167 = vpop.f32.mrb[0].mxu0
        %1168 = vmatprep.mubr.bf16.mxu0 0
        %1169 = vmatmul.mubr.bf16.gmra.mrb[0].mxu0 %v1024
        %v1170 = vpop.f32.mrb[0].mxu0
        %v1171 = vadd.f32 %v876, %v1170
        %v1172 = vpop.f32.mrb[0].mxu0
        %v1173 = vpop.f32.mrb[0].mxu0
        %v1174 = vadd.f32 %v879, %v1173
        %v1175 = vpop.f32.mrb[0].mxu0
        %1176 = vmatprep.mubr.bf16.mxu0 0
        %1177 = vmatmul.mubr.bf16.gmra.mrb[0].mxu0 %v1027
        %v1178 = vpop.f32.mrb[0].mxu0
        %v1179 = vadd.f32 %v884, %v1178
        %v1180 = vpop.f32.mrb[0].mxu0
        %v1181 = vpop.f32.mrb[0].mxu0
        %v1182 = vadd.f32 %v887, %v1181
        %v1183 = vpop.f32.mrb[0].mxu0
        %1184 = vmatprep.mubr.bf16.mxu0 0
        %1185 = vmatmul.mubr.bf16.gmra.mrb[0].mxu0 %v1030
        %v1186 = vpop.f32.mrb[0].mxu0
        %v1187 = vadd.f32 %v892, %v1186
        %v1188 = vpop.f32.mrb[0].mxu0
        %v1189 = vpop.f32.mrb[0].mxu0
        %v1190 = vadd.f32 %v895, %v1189
        %v1191 = vpop.f32.mrb[0].mxu0
        %1192 = vdwg.mxu0
        %vm1209 = vcmask 1042432
        %vm1210 = vcmask 1046532
        %vm1211 = vmor %vm1209, %vm1210
        %v1212 = vrot.slane %v189, 5
        %v1213 = vrot.slane %v1212, 4
        %v1214 = vrot.slane %v190, 5
        %v1215 = vsel %vm1211, %v1213, %v1214
        %v1216 = vrot.slane %v1214, 4
        %v1217 = vrot.slane %v191, 5
        %v1218 = vsel %vm1211, %v1216, %v1217
        %v1219 = vrot.slane %v192, 5
        %v1220 = vrot.slane %v1219, 4
        %v1221 = vrot.slane %v193, 5
        %v1222 = vsel %vm1211, %v1220, %v1221
        %v1223 = vrot.slane %v1221, 4
        %v1224 = vrot.slane %v194, 5
        %v1225 = vsel %vm1211, %v1223, %v1224
        %v1226 = vrot.slane %v195, 5
        %v1227 = vrot.slane %v1226, 4
        %v1228 = vrot.slane %v196, 5
        %v1229 = vsel %vm1211, %v1227, %v1228
        %v1230 = vrot.slane %v1228, 4
        %v1231 = vrot.slane %v197, 5
        %v1232 = vsel %vm1211, %v1230, %v1231
        %v1233 = vrot.slane %v198, 5
        %v1234 = vrot.slane %v1233, 4
        %v1235 = vrot.slane %v199, 5
        %v1236 = vsel %vm1211, %v1234, %v1235
        %v1237 = vrot.slane %v1235, 4
        %v1238 = vrot.slane %v200, 5
        %v1239 = vsel %vm1211, %v1237, %v1238
        %v1240 = vrot.slane %v201, 5
        %v1241 = vrot.slane %v1240, 4
        %v1242 = vrot.slane %v202, 5
        %v1243 = vsel %vm1211, %v1241, %v1242
        %v1244 = vrot.slane %v1242, 4
        %v1245 = vrot.slane %v203, 5
        %v1246 = vsel %vm1211, %v1244, %v1245
        %v1247 = vrot.slane %v204, 5
        %v1248 = vrot.slane %v1247, 4
        %v1249 = vrot.slane %v205, 5
        %v1250 = vsel %vm1211, %v1248, %v1249
        %v1251 = vrot.slane %v1249, 4
        %v1252 = vrot.slane %v206, 5
        %v1253 = vsel %vm1211, %v1251, %v1252
        %v1254 = vrot.slane %v207, 5
        %v1255 = vrot.slane %v1254, 4
        %v1256 = vrot.slane %v208, 5
        %v1257 = vsel %vm1211, %v1255, %v1256
        %v1258 = vrot.slane %v1256, 4
        %v1259 = vrot.slane %v209, 5
        %v1260 = vsel %vm1211, %v1258, %v1259
        %v1261 = vrot.slane %v210, 5
        %v1262 = vrot.slane %v1261, 4
        %v1263 = vrot.slane %v211, 5
        %v1264 = vsel %vm1211, %v1262, %v1263
        %v1265 = vrot.slane %v1263, 4
        %v1266 = vrot.slane %v212, 5
        %v1267 = vsel %vm1211, %v1265, %v1266
        %v1268 = vrot.slane %v213, 5
        %v1269 = vrot.slane %v1268, 4
        %v1270 = vrot.slane %v214, 5
        %v1271 = vsel %vm1211, %v1269, %v1270
        %v1272 = vrot.slane %v1270, 4
        %v1273 = vrot.slane %v215, 5
        %v1274 = vsel %vm1211, %v1272, %v1273
        %v1275 = vrot.slane %v216, 5
        %v1276 = vrot.slane %v1275, 4
        %v1277 = vrot.slane %v217, 5
        %v1278 = vsel %vm1211, %v1276, %v1277
        %v1279 = vrot.slane %v1277, 4
        %v1280 = vrot.slane %v218, 5
        %v1281 = vsel %vm1211, %v1279, %v1280
        %v1282 = vrot.slane %v219, 5
        %v1283 = vrot.slane %v1282, 4
        %v1284 = vrot.slane %v220, 5
        %v1285 = vsel %vm1211, %v1283, %v1284
        %v1286 = vrot.slane %v1284, 4
        %v1287 = vrot.slane %v221, 5
        %v1288 = vsel %vm1211, %v1286, %v1287
        %v1289 = vrot.slane %v222, 5
        %v1290 = vrot.slane %v1289, 4
        %v1291 = vrot.slane %v223, 5
        %v1292 = vsel %vm1211, %v1290, %v1291
        %v1293 = vrot.slane %v1291, 4
        %v1294 = vrot.slane %v224, 5
        %v1295 = vsel %vm1211, %v1293, %v1294
        %v1296 = vrot.slane %v225, 5
        %v1297 = vrot.slane %v1296, 4
        %v1298 = vrot.slane %v226, 5
        %v1299 = vsel %vm1211, %v1297, %v1298
        %v1300 = vrot.slane %v1298, 4
        %v1301 = vrot.slane %v227, 5
        %v1302 = vsel %vm1211, %v1300, %v1301
        %v1303 = vrot.slane %v228, 5
        %v1304 = vrot.slane %v1303, 4
        %v1305 = vrot.slane %v229, 5
        %v1306 = vsel %vm1211, %v1304, %v1305
        %v1307 = vrot.slane %v1305, 4
        %v1308 = vrot.slane %v230, 5
        %v1309 = vsel %vm1211, %v1307, %v1308
        %v1310 = vrot.slane %v231, 5
        %v1311 = vrot.slane %v1310, 4
        %v1312 = vrot.slane %v232, 5
        %v1313 = vsel %vm1211, %v1311, %v1312
        %v1314 = vrot.slane %v1312, 4
        %v1315 = vrot.slane %v233, 5
        %v1316 = vsel %vm1211, %v1314, %v1315
        %v1317 = vrot.slane %v234, 5
        %v1318 = vrot.slane %v1317, 4
        %v1319 = vrot.slane %v235, 5
        %v1320 = vsel %vm1211, %v1318, %v1319
        %v1321 = vrot.slane %v1319, 4
        %v1322 = vrot.slane %v236, 5
        %v1323 = vsel %vm1211, %v1321, %v1322
        %v1324 = vld [vmem:[%s1 + $0x10] sm:$0xf]
        %v1325 = vld [vmem:[%s1 + $0x14] sm:$0xf]
        %v1326 = vunpack.c.l.b16 %v1215
        %v1327 = vunpack.c.l.b16 %v1218
        %v1328 = vunpack.c.l.b16 %v1222
        %v1329 = vunpack.c.l.b16 %v1225
        %v1330 = vunpack.c.l.b16 %v1229
        %v1331 = vunpack.c.l.b16 %v1232
        %v1332 = vunpack.c.l.b16 %v1236
        %v1333 = vunpack.c.l.b16 %v1239
        %v1334 = vunpack.c.l.b16 %v1243
        %v1335 = vunpack.c.l.b16 %v1246
        %v1336 = vunpack.c.l.b16 %v1250
        %v1337 = vunpack.c.l.b16 %v1253
        %v1338 = vunpack.c.l.b16 %v1257
        %v1339 = vunpack.c.l.b16 %v1260
        %v1340 = vunpack.c.l.b16 %v1264
        %v1341 = vunpack.c.l.b16 %v1267
        %v1342 = vunpack.c.l.b16 %v1271
        %v1343 = vunpack.c.l.b16 %v1274
        %v1344 = vunpack.c.l.b16 %v1278
        %v1345 = vunpack.c.l.b16 %v1281
        %v1346 = vunpack.c.l.b16 %v1285
        %v1347 = vunpack.c.l.b16 %v1288
        %v1348 = vunpack.c.l.b16 %v1292
        %v1349 = vunpack.c.l.b16 %v1295
        %v1350 = vunpack.c.l.b16 %v1299
        %v1351 = vunpack.c.l.b16 %v1302
        %v1352 = vunpack.c.l.b16 %v1306
        %v1353 = vunpack.c.l.b16 %v1309
        %v1354 = vunpack.c.l.b16 %v1313
        %v1355 = vunpack.c.l.b16 %v1316
        %v1356 = vunpack.c.l.b16 %v1320
        %v1357 = vunpack.c.l.b16 %v1323
        %v1358 = vpack.c.b16 %v1327, %v1326
        %v1359 = vpack.c.b16 %v1329, %v1328
        %v1360 = vpack.c.b16 %v1331, %v1330
        %v1361 = vpack.c.b16 %v1333, %v1332
        %v1362 = vpack.c.b16 %v1335, %v1334
        %v1363 = vpack.c.b16 %v1337, %v1336
        %v1364 = vpack.c.b16 %v1339, %v1338
        %v1365 = vpack.c.b16 %v1341, %v1340
        %v1366 = vpack.c.b16 %v1343, %v1342
        %v1367 = vpack.c.b16 %v1345, %v1344
        %v1368 = vpack.c.b16 %v1347, %v1346
        %v1369 = vpack.c.b16 %v1349, %v1348
        %v1370 = vpack.c.b16 %v1351, %v1350
        %v1371 = vpack.c.b16 %v1353, %v1352
        %v1372 = vpack.c.b16 %v1355, %v1354
        %v1373 = vpack.c.b16 %v1357, %v1356
        %v1376 = vunpack.c.l.b16 %v1324
        %v1377 = vunpack.c.l.b16 %v1325
        %v1378 = vpack.c.b16 %v1377, %v1376
        %v1381 = vsel %vm688, %v1358, 0
        %v1384 = vsel %vm688, %v1359, 0
        %v1387 = vsel %vm688, %v1360, 0
        %v1390 = vsel %vm688, %v1361, 0
        %v1393 = vsel %vm688, %v1362, 0
        %v1396 = vsel %vm688, %v1363, 0
        %v1399 = vsel %vm688, %v1364, 0
        %v1402 = vsel %vm688, %v1365, 0
        %v1405 = vsel %vm688, %v1366, 0
        %v1408 = vsel %vm688, %v1367, 0
        %v1411 = vsel %vm688, %v1368, 0
        %v1414 = vsel %vm688, %v1369, 0
        %v1417 = vsel %vm688, %v1370, 0
        %v1420 = vsel %vm688, %v1371, 0
        %v1423 = vsel %vm688, %v1372, 0
        %v1426 = vsel %vm688, %v1373, 0
        %1428 = vmatprep.subr.bf16.mxu0 0
        %1429 = vmatpush1.bf16.msra.mxu0 %v1378
        %1430 = vmatprep.subr.bf16.mxu0 0
        %1431 = vmatpush1.bf16.msra.mxu0 0
        %1432 = vmatprep.subr.bf16.mxu0 0
        %1433 = vmatpush1.bf16.msra.mxu0 0
        %1434 = vmatprep.subr.bf16.mxu0 0
        %1435 = vmatpush1.bf16.msra.mxu0 0
        %1436 = vmatprep.subr.bf16.mxu0 0
        %1437 = vmatpush1.bf16.msra.mxu0 0
        %1438 = vmatprep.subr.bf16.mxu0 0
        %1439 = vmatpush1.bf16.msra.mxu0 0
        %1440 = vmatprep.subr.bf16.mxu0 0
        %1441 = vmatpush1.bf16.msra.mxu0 0
        %1442 = vmatprep.subr.bf16.mxu0 0
        %1443 = vmatpush1.bf16.msra.mxu0 0
        %1444 = vmatprep.subr.bf16.mxu0 0
        %1445 = vmatpush1.bf16.msra.mxu0 0
        %1446 = vmatprep.subr.bf16.mxu0 0
        %1447 = vmatpush1.bf16.msra.mxu0 0
        %1448 = vmatprep.subr.bf16.mxu0 0
        %1449 = vmatpush1.bf16.msra.mxu0 0
        %1450 = vmatprep.subr.bf16.mxu0 0
        %1451 = vmatpush1.bf16.msra.mxu0 0
        %1452 = vmatprep.subr.bf16.mxu0 0
        %1453 = vmatpush1.bf16.msra.mxu0 0
        %1454 = vmatprep.subr.bf16.mxu0 0
        %1455 = vmatpush1.bf16.msra.mxu0 0
        %1456 = vmatprep.subr.bf16.mxu0 0
        %1457 = vmatpush1.bf16.msra.mxu0 0
        %1458 = vmatprep.subr.bf16.mxu0 0
        %1459 = vmatpush1.bf16.msra.mxu0 0
        %1460 = vmatprep.mubr.bf16.mxu0 0
        %1461 = vmatmul.mubr.bf16.gmra.mrb[0].mxu0 %v1381
        %v1462 = vpop.f32.mrb[0].mxu0
        %v1463 = vadd.f32 0.0, %v1462
        %v1464 = vpop.f32.mrb[0].mxu0
        %v1465 = vpop.f32.mrb[0].mxu0
        %v1466 = vadd.f32 0.0, %v1465
        %v1467 = vpop.f32.mrb[0].mxu0
        %1468 = vmatprep.mubr.bf16.mxu0 0
        %1469 = vmatmul.mubr.bf16.gmra.mrb[0].mxu0 %v1384
        %v1470 = vpop.f32.mrb[0].mxu0
        %v1471 = vadd.f32 0.0, %v1470
        %v1472 = vpop.f32.mrb[0].mxu0
        %v1473 = vpop.f32.mrb[0].mxu0
        %v1474 = vadd.f32 0.0, %v1473
        %v1475 = vpop.f32.mrb[0].mxu0
        %1476 = vmatprep.mubr.bf16.mxu0 0
        %1477 = vmatmul.mubr.bf16.gmra.mrb[0].mxu0 %v1387
        %v1478 = vpop.f32.mrb[0].mxu0
        %v1479 = vadd.f32 0.0, %v1478
        %v1480 = vpop.f32.mrb[0].mxu0
        %v1481 = vpop.f32.mrb[0].mxu0
        %v1482 = vadd.f32 0.0, %v1481
        %v1483 = vpop.f32.mrb[0].mxu0
        %1484 = vmatprep.mubr.bf16.mxu0 0
        %1485 = vmatmul.mubr.bf16.gmra.mrb[0].mxu0 %v1390
        %v1486 = vpop.f32.mrb[0].mxu0
        %v1487 = vadd.f32 0.0, %v1486
        %v1488 = vpop.f32.mrb[0].mxu0
        %v1489 = vpop.f32.mrb[0].mxu0
        %v1490 = vadd.f32 0.0, %v1489
        %v1491 = vpop.f32.mrb[0].mxu0
        %1492 = vmatprep.mubr.bf16.mxu0 0
        %1493 = vmatmul.mubr.bf16.gmra.mrb[0].mxu0 %v1393
        %v1494 = vpop.f32.mrb[0].mxu0
        %v1495 = vadd.f32 0.0, %v1494
        %v1496 = vpop.f32.mrb[0].mxu0
        %v1497 = vpop.f32.mrb[0].mxu0
        %v1498 = vadd.f32 0.0, %v1497
        %v1499 = vpop.f32.mrb[0].mxu0
        %1500 = vmatprep.mubr.bf16.mxu0 0
        %1501 = vmatmul.mubr.bf16.gmra.mrb[0].mxu0 %v1396
        %v1502 = vpop.f32.mrb[0].mxu0
        %v1503 = vadd.f32 0.0, %v1502
        %v1504 = vpop.f32.mrb[0].mxu0
        %v1505 = vpop.f32.mrb[0].mxu0
        %v1506 = vadd.f32 0.0, %v1505
        %v1507 = vpop.f32.mrb[0].mxu0
        %1508 = vmatprep.mubr.bf16.mxu0 0
        %1509 = vmatmul.mubr.bf16.gmra.mrb[0].mxu0 %v1399
        %v1510 = vpop.f32.mrb[0].mxu0
        %v1511 = vadd.f32 0.0, %v1510
        %v1512 = vpop.f32.mrb[0].mxu0
        %v1513 = vpop.f32.mrb[0].mxu0
        %v1514 = vadd.f32 0.0, %v1513
        %v1515 = vpop.f32.mrb[0].mxu0
        %1516 = vmatprep.mubr.bf16.mxu0 0
        %1517 = vmatmul.mubr.bf16.gmra.mrb[0].mxu0 %v1402
        %v1518 = vpop.f32.mrb[0].mxu0
        %v1519 = vadd.f32 0.0, %v1518
        %v1520 = vpop.f32.mrb[0].mxu0
        %v1521 = vpop.f32.mrb[0].mxu0
        %v1522 = vadd.f32 0.0, %v1521
        %v1523 = vpop.f32.mrb[0].mxu0
        %1524 = vmatprep.mubr.bf16.mxu0 0
        %1525 = vmatmul.mubr.bf16.gmra.mrb[0].mxu0 %v1405
        %v1526 = vpop.f32.mrb[0].mxu0
        %v1527 = vadd.f32 0.0, %v1526
        %v1528 = vpop.f32.mrb[0].mxu0
        %v1529 = vpop.f32.mrb[0].mxu0
        %v1530 = vadd.f32 0.0, %v1529
        %v1531 = vpop.f32.mrb[0].mxu0
        %1532 = vmatprep.mubr.bf16.mxu0 0
        %1533 = vmatmul.mubr.bf16.gmra.mrb[0].mxu0 %v1408
        %v1534 = vpop.f32.mrb[0].mxu0
        %v1535 = vadd.f32 0.0, %v1534
        %v1536 = vpop.f32.mrb[0].mxu0
        %v1537 = vpop.f32.mrb[0].mxu0
        %v1538 = vadd.f32 0.0, %v1537
        %v1539 = vpop.f32.mrb[0].mxu0
        %1540 = vmatprep.mubr.bf16.mxu0 0
        %1541 = vmatmul.mubr.bf16.gmra.mrb[0].mxu0 %v1411
        %v1542 = vpop.f32.mrb[0].mxu0
        %v1543 = vadd.f32 0.0, %v1542
        %v1544 = vpop.f32.mrb[0].mxu0
        %v1545 = vpop.f32.mrb[0].mxu0
        %v1546 = vadd.f32 0.0, %v1545
        %v1547 = vpop.f32.mrb[0].mxu0
        %1548 = vmatprep.mubr.bf16.mxu0 0
        %1549 = vmatmul.mubr.bf16.gmra.mrb[0].mxu0 %v1414
        %v1550 = vpop.f32.mrb[0].mxu0
        %v1551 = vadd.f32 0.0, %v1550
        %v1552 = vpop.f32.mrb[0].mxu0
        %v1553 = vpop.f32.mrb[0].mxu0
        %v1554 = vadd.f32 0.0, %v1553
        %v1555 = vpop.f32.mrb[0].mxu0
        %1556 = vmatprep.mubr.bf16.mxu0 0
        %1557 = vmatmul.mubr.bf16.gmra.mrb[0].mxu0 %v1417
        %v1558 = vpop.f32.mrb[0].mxu0
        %v1559 = vadd.f32 0.0, %v1558
        %v1560 = vpop.f32.mrb[0].mxu0
        %v1561 = vpop.f32.mrb[0].mxu0
        %v1562 = vadd.f32 0.0, %v1561
        %v1563 = vpop.f32.mrb[0].mxu0
        %1564 = vmatprep.mubr.bf16.mxu0 0
        %1565 = vmatmul.mubr.bf16.gmra.mrb[0].mxu0 %v1420
        %v1566 = vpop.f32.mrb[0].mxu0
        %v1567 = vadd.f32 0.0, %v1566
        %v1568 = vpop.f32.mrb[0].mxu0
        %v1569 = vpop.f32.mrb[0].mxu0
        %v1570 = vadd.f32 0.0, %v1569
        %v1571 = vpop.f32.mrb[0].mxu0
        %1572 = vmatprep.mubr.bf16.mxu0 0
        %1573 = vmatmul.mubr.bf16.gmra.mrb[0].mxu0 %v1423
        %v1574 = vpop.f32.mrb[0].mxu0
        %v1575 = vadd.f32 0.0, %v1574
        %v1576 = vpop.f32.mrb[0].mxu0
        %v1577 = vpop.f32.mrb[0].mxu0
        %v1578 = vadd.f32 0.0, %v1577
        %v1579 = vpop.f32.mrb[0].mxu0
        %1580 = vmatprep.mubr.bf16.mxu0 0
        %1581 = vmatmul.mubr.bf16.gmra.mrb[0].mxu0 %v1426
        %v1582 = vpop.f32.mrb[0].mxu0
        %v1583 = vadd.f32 0.0, %v1582
        %v1584 = vpop.f32.mrb[0].mxu0
        %v1585 = vpop.f32.mrb[0].mxu0
        %v1586 = vadd.f32 0.0, %v1585
        %v1587 = vpop.f32.mrb[0].mxu0
        %1588 = vdwg.mxu0
        %v1589 = vadd.f32 %v1067, %v1463
        %v1590 = vadd.f32 %v1070, %v1466
        %v1591 = vadd.f32 %v1075, %v1471
        %v1592 = vadd.f32 %v1078, %v1474
        %v1593 = vadd.f32 %v1083, %v1479
        %v1594 = vadd.f32 %v1086, %v1482
        %v1595 = vadd.f32 %v1091, %v1487
        %v1596 = vadd.f32 %v1094, %v1490
        %v1597 = vadd.f32 %v1099, %v1495
        %v1598 = vadd.f32 %v1102, %v1498
        %v1599 = vadd.f32 %v1107, %v1503
        %v1600 = vadd.f32 %v1110, %v1506
        %v1601 = vadd.f32 %v1115, %v1511
        %v1602 = vadd.f32 %v1118, %v1514
        %v1603 = vadd.f32 %v1123, %v1519
        %v1604 = vadd.f32 %v1126, %v1522
        %v1605 = vadd.f32 %v1131, %v1527
        %v1606 = vadd.f32 %v1134, %v1530
        %v1607 = vadd.f32 %v1139, %v1535
        %v1608 = vadd.f32 %v1142, %v1538
        %v1609 = vadd.f32 %v1147, %v1543
        %v1610 = vadd.f32 %v1150, %v1546
        %v1611 = vadd.f32 %v1155, %v1551
        %v1612 = vadd.f32 %v1158, %v1554
        %v1613 = vadd.f32 %v1163, %v1559
        %v1614 = vadd.f32 %v1166, %v1562
        %v1615 = vadd.f32 %v1171, %v1567
        %v1616 = vadd.f32 %v1174, %v1570
        %v1617 = vadd.f32 %v1179, %v1575
        %v1618 = vadd.f32 %v1182, %v1578
        %v1619 = vadd.f32 %v1187, %v1583
        %v1620 = vadd.f32 %v1190, %v1586
        %v1621 = vld [vmem:[%s1 + $0x18] sm:$0xf]
        %v1622 = vld [vmem:[%s1 + $0x1c] sm:$0xf]
        %v1625 = vunpack.c.l.b16 %v237
        %v1626 = vunpack.c.l.b16 %v238
        %v1627 = vpack.c.b16 %v1626, %v1625
        %v1630 = vunpack.c.l.b16 %v1621
        %v1631 = vunpack.c.l.b16 %v1622
        %v1632 = vpack.c.b16 %v1631, %v1630
        %v1635 = vsel %vm688, %v1627, 0
        %1637 = vmatprep.subr.bf16.mxu0 0
        %1638 = vmatpush1.bf16.msra.mxu0 %v1632
        %1639 = vmatprep.subr.bf16.mxu0 0
        %1640 = vmatpush1.bf16.msra.mxu0 0
        %1641 = vmatprep.subr.bf16.mxu0 0
        %1642 = vmatpush1.bf16.msra.mxu0 0
        %1643 = vmatprep.subr.bf16.mxu0 0
        %1644 = vmatpush1.bf16.msra.mxu0 0
        %1645 = vmatprep.subr.bf16.mxu0 0
        %1646 = vmatpush1.bf16.msra.mxu0 0
        %1647 = vmatprep.subr.bf16.mxu0 0
        %1648 = vmatpush1.bf16.msra.mxu0 0
        %1649 = vmatprep.subr.bf16.mxu0 0
        %1650 = vmatpush1.bf16.msra.mxu0 0
        %1651 = vmatprep.subr.bf16.mxu0 0
        %1652 = vmatpush1.bf16.msra.mxu0 0
        %1653 = vmatprep.subr.bf16.mxu0 0
        %1654 = vmatpush1.bf16.msra.mxu0 0
        %1655 = vmatprep.subr.bf16.mxu0 0
        %1656 = vmatpush1.bf16.msra.mxu0 0
        %1657 = vmatprep.subr.bf16.mxu0 0
        %1658 = vmatpush1.bf16.msra.mxu0 0
        %1659 = vmatprep.subr.bf16.mxu0 0
        %1660 = vmatpush1.bf16.msra.mxu0 0
        %1661 = vmatprep.subr.bf16.mxu0 0
        %1662 = vmatpush1.bf16.msra.mxu0 0
        %1663 = vmatprep.subr.bf16.mxu0 0
        %1664 = vmatpush1.bf16.msra.mxu0 0
        %1665 = vmatprep.subr.bf16.mxu0 0
        %1666 = vmatpush1.bf16.msra.mxu0 0
        %1667 = vmatprep.subr.bf16.mxu0 0
        %1668 = vmatpush1.bf16.msra.mxu0 0
        %1669 = vmatprep.mubr.bf16.mxu0 0
        %1670 = vmatmul.mubr.bf16.gmra.mrb[0].mxu0 %v988
        %v1671 = vpop.f32.mrb[0].mxu0
        %v1672 = vadd.f32 0.0, %v1671
        %v1673 = vpop.f32.mrb[0].mxu0
        %v1674 = vpop.f32.mrb[0].mxu0
        %v1675 = vadd.f32 0.0, %v1674
        %v1676 = vpop.f32.mrb[0].mxu0
        %1677 = vmatprep.mubr.bf16.mxu0 0
        %1678 = vmatmul.mubr.bf16.gmra.mrb[0].mxu0 %v991
        %v1679 = vpop.f32.mrb[0].mxu0
        %v1680 = vadd.f32 0.0, %v1679
        %v1681 = vpop.f32.mrb[0].mxu0
        %v1682 = vpop.f32.mrb[0].mxu0
        %v1683 = vadd.f32 0.0, %v1682
        %v1684 = vpop.f32.mrb[0].mxu0
        %1685 = vmatprep.mubr.bf16.mxu0 0
        %1686 = vmatmul.mubr.bf16.gmra.mrb[0].mxu0 %v994
        %v1687 = vpop.f32.mrb[0].mxu0
        %v1688 = vadd.f32 0.0, %v1687
        %v1689 = vpop.f32.mrb[0].mxu0
        %v1690 = vpop.f32.mrb[0].mxu0
        %v1691 = vadd.f32 0.0, %v1690
        %v1692 = vpop.f32.mrb[0].mxu0
        %1693 = vmatprep.mubr.bf16.mxu0 0
        %1694 = vmatmul.mubr.bf16.gmra.mrb[0].mxu0 %v997
        %v1695 = vpop.f32.mrb[0].mxu0
        %v1696 = vadd.f32 0.0, %v1695
        %v1697 = vpop.f32.mrb[0].mxu0
        %v1698 = vpop.f32.mrb[0].mxu0
        %v1699 = vadd.f32 0.0, %v1698
        %v1700 = vpop.f32.mrb[0].mxu0
        %1701 = vmatprep.mubr.bf16.mxu0 0
        %1702 = vmatmul.mubr.bf16.gmra.mrb[0].mxu0 %v1000
        %v1703 = vpop.f32.mrb[0].mxu0
        %v1704 = vadd.f32 0.0, %v1703
        %v1705 = vpop.f32.mrb[0].mxu0
        %v1706 = vpop.f32.mrb[0].mxu0
        %v1707 = vadd.f32 0.0, %v1706
        %v1708 = vpop.f32.mrb[0].mxu0
        %1709 = vmatprep.mubr.bf16.mxu0 0
        %1710 = vmatmul.mubr.bf16.gmra.mrb[0].mxu0 %v1003
        %v1711 = vpop.f32.mrb[0].mxu0
        %v1712 = vadd.f32 0.0, %v1711
        %v1713 = vpop.f32.mrb[0].mxu0
        %v1714 = vpop.f32.mrb[0].mxu0
        %v1715 = vadd.f32 0.0, %v1714
        %v1716 = vpop.f32.mrb[0].mxu0
        %1717 = vmatprep.mubr.bf16.mxu0 0
        %1718 = vmatmul.mubr.bf16.gmra.mrb[0].mxu0 %v1006
        %v1719 = vpop.f32.mrb[0].mxu0
        %v1720 = vadd.f32 0.0, %v1719
        %v1721 = vpop.f32.mrb[0].mxu0
        %v1722 = vpop.f32.mrb[0].mxu0
        %v1723 = vadd.f32 0.0, %v1722
        %v1724 = vpop.f32.mrb[0].mxu0
        %1725 = vmatprep.mubr.bf16.mxu0 0
        %1726 = vmatmul.mubr.bf16.gmra.mrb[0].mxu0 %v1009
        %v1727 = vpop.f32.mrb[0].mxu0
        %v1728 = vadd.f32 0.0, %v1727
        %v1729 = vpop.f32.mrb[0].mxu0
        %v1730 = vpop.f32.mrb[0].mxu0
        %v1731 = vadd.f32 0.0, %v1730
        %v1732 = vpop.f32.mrb[0].mxu0
        %1733 = vmatprep.mubr.bf16.mxu0 0
        %1734 = vmatmul.mubr.bf16.gmra.mrb[0].mxu0 %v1012
        %v1735 = vpop.f32.mrb[0].mxu0
        %v1736 = vadd.f32 0.0, %v1735
        %v1737 = vpop.f32.mrb[0].mxu0
        %v1738 = vpop.f32.mrb[0].mxu0
        %v1739 = vadd.f32 0.0, %v1738
        %v1740 = vpop.f32.mrb[0].mxu0
        %1741 = vmatprep.mubr.bf16.mxu0 0
        %1742 = vmatmul.mubr.bf16.gmra.mrb[0].mxu0 %v1015
        %v1743 = vpop.f32.mrb[0].mxu0
        %v1744 = vadd.f32 0.0, %v1743
        %v1745 = vpop.f32.mrb[0].mxu0
        %v1746 = vpop.f32.mrb[0].mxu0
        %v1747 = vadd.f32 0.0, %v1746
        %v1748 = vpop.f32.mrb[0].mxu0
        %1749 = vmatprep.mubr.bf16.mxu0 0
        %1750 = vmatmul.mubr.bf16.gmra.mrb[0].mxu0 %v1018
        %v1751 = vpop.f32.mrb[0].mxu0
        %v1752 = vadd.f32 0.0, %v1751
        %v1753 = vpop.f32.mrb[0].mxu0
        %v1754 = vpop.f32.mrb[0].mxu0
        %v1755 = vadd.f32 0.0, %v1754
        %v1756 = vpop.f32.mrb[0].mxu0
        %1757 = vmatprep.mubr.bf16.mxu0 0
        %1758 = vmatmul.mubr.bf16.gmra.mrb[0].mxu0 %v1021
        %v1759 = vpop.f32.mrb[0].mxu0
        %v1760 = vadd.f32 0.0, %v1759
        %v1761 = vpop.f32.mrb[0].mxu0
        %v1762 = vpop.f32.mrb[0].mxu0
        %v1763 = vadd.f32 0.0, %v1762
        %v1764 = vpop.f32.mrb[0].mxu0
        %1765 = vmatprep.mubr.bf16.mxu0 0
        %1766 = vmatmul.mubr.bf16.gmra.mrb[0].mxu0 %v1024
        %v1767 = vpop.f32.mrb[0].mxu0
        %v1768 = vadd.f32 0.0, %v1767
        %v1769 = vpop.f32.mrb[0].mxu0
        %v1770 = vpop.f32.mrb[0].mxu0
        %v1771 = vadd.f32 0.0, %v1770
        %v1772 = vpop.f32.mrb[0].mxu0
        %1773 = vmatprep.mubr.bf16.mxu0 0
        %1774 = vmatmul.mubr.bf16.gmra.mrb[0].mxu0 %v1027
        %v1775 = vpop.f32.mrb[0].mxu0
        %v1776 = vadd.f32 0.0, %v1775
        %v1777 = vpop.f32.mrb[0].mxu0
        %v1778 = vpop.f32.mrb[0].mxu0
        %v1779 = vadd.f32 0.0, %v1778
        %v1780 = vpop.f32.mrb[0].mxu0
        %1781 = vmatprep.mubr.bf16.mxu0 0
        %1782 = vmatmul.mubr.bf16.gmra.mrb[0].mxu0 %v1030
        %v1783 = vpop.f32.mrb[0].mxu0
        %v1784 = vadd.f32 0.0, %v1783
        %v1785 = vpop.f32.mrb[0].mxu0
        %v1786 = vpop.f32.mrb[0].mxu0
        %v1787 = vadd.f32 0.0, %v1786
        %v1788 = vpop.f32.mrb[0].mxu0
        %1789 = vmatprep.mubr.bf16.mxu0 0
        %1790 = vmatmul.mubr.bf16.gmra.mrb[0].mxu0 %v1635
        %v1791 = vpop.f32.mrb[0].mxu0
        %v1792 = vadd.f32 0.0, %v1791
        %v1793 = vpop.f32.mrb[0].mxu0
        %v1794 = vpop.f32.mrb[0].mxu0
        %v1795 = vadd.f32 0.0, %v1794
        %v1796 = vpop.f32.mrb[0].mxu0
        %1797 = vdwg.mxu0
        %v1798 = vadd.f32 %v1589, %v1672
        %v1799 = vadd.f32 %v1590, %v1675
        %v1800 = vadd.f32 %v1591, %v1680
        %v1801 = vadd.f32 %v1592, %v1683
        %v1802 = vadd.f32 %v1593, %v1688
        %v1803 = vadd.f32 %v1594, %v1691
        %v1804 = vadd.f32 %v1595, %v1696
        %v1805 = vadd.f32 %v1596, %v1699
        %v1806 = vadd.f32 %v1597, %v1704
        %v1807 = vadd.f32 %v1598, %v1707
        %v1808 = vadd.f32 %v1599, %v1712
        %v1809 = vadd.f32 %v1600, %v1715
        %v1810 = vadd.f32 %v1601, %v1720
        %v1811 = vadd.f32 %v1602, %v1723
        %v1812 = vadd.f32 %v1603, %v1728
        %v1813 = vadd.f32 %v1604, %v1731
        %v1814 = vadd.f32 %v1605, %v1736
        %v1815 = vadd.f32 %v1606, %v1739
        %v1816 = vadd.f32 %v1607, %v1744
        %v1817 = vadd.f32 %v1608, %v1747
        %v1818 = vadd.f32 %v1609, %v1752
        %v1819 = vadd.f32 %v1610, %v1755
        %v1820 = vadd.f32 %v1611, %v1760
        %v1821 = vadd.f32 %v1612, %v1763
        %v1822 = vadd.f32 %v1613, %v1768
        %v1823 = vadd.f32 %v1614, %v1771
        %v1824 = vadd.f32 %v1615, %v1776
        %v1825 = vadd.f32 %v1616, %v1779
        %v1826 = vadd.f32 %v1617, %v1784
        %v1827 = vadd.f32 %v1618, %v1787
        %v1828 = vadd.f32 %v1619, %v1792
        %v1829 = vadd.f32 %v1620, %v1795
        %v1831 = vshrl.u32 %v237, 16
        %v1833 = vrot.slane %v1831, 4
        %v1834 = vshll.u32 %v237, 16
        %v1836 = vrot.slane %v1834, 5
        %v1837 = vor.u32 %v1833, %v1836
        %v1838 = vrot.slane %v1837, 4
        %v1840 = vshll.u32 %v238, 16
        %v1842 = vrot.slane %v1840, 5
        %v1843 = vsel %vm247, %v1838, %v1842
        %v1844 = vshrl.u32 %v238, 16
        %v1846 = vrot.slane %v1844, 4
        %v1847 = vor.u32 %v1846, %v1842
        %v1848 = vrot.slane %v1847, 4
        %v1850 = vshll.u32 %v239, 16
        %v1852 = vrot.slane %v1850, 5
        %v1853 = vsel %vm247, %v1848, %v1852
        %v1854 = vld [vmem:[%s1 + $0x20] sm:$0xf]
        %v1855 = vld [vmem:[%s1 + $0x24] sm:$0xf]
        %v1856 = vunpack.c.l.b16 %v1843
        %v1857 = vunpack.c.l.b16 %v1853
        %v1858 = vpack.c.b16 %v1857, %v1856
        %v1861 = vunpack.c.l.b16 %v1854
        %v1862 = vunpack.c.l.b16 %v1855
        %v1863 = vpack.c.b16 %v1862, %v1861
        %v1866 = vsel %vm688, %v1858, 0
        %1868 = vmatprep.subr.bf16.mxu0 0
        %1869 = vmatpush1.bf16.msra.mxu0 %v1863
        %1870 = vmatprep.subr.bf16.mxu0 0
        %1871 = vmatpush1.bf16.msra.mxu0 0
        %1872 = vmatprep.subr.bf16.mxu0 0
        %1873 = vmatpush1.bf16.msra.mxu0 0
        %1874 = vmatprep.subr.bf16.mxu0 0
        %1875 = vmatpush1.bf16.msra.mxu0 0
        %1876 = vmatprep.subr.bf16.mxu0 0
        %1877 = vmatpush1.bf16.msra.mxu0 0
        %1878 = vmatprep.subr.bf16.mxu0 0
        %1879 = vmatpush1.bf16.msra.mxu0 0
        %1880 = vmatprep.subr.bf16.mxu0 0
        %1881 = vmatpush1.bf16.msra.mxu0 0
        %1882 = vmatprep.subr.bf16.mxu0 0
        %1883 = vmatpush1.bf16.msra.mxu0 0
        %1884 = vmatprep.subr.bf16.mxu0 0
        %1885 = vmatpush1.bf16.msra.mxu0 0
        %1886 = vmatprep.subr.bf16.mxu0 0
        %1887 = vmatpush1.bf16.msra.mxu0 0
        %1888 = vmatprep.subr.bf16.mxu0 0
        %1889 = vmatpush1.bf16.msra.mxu0 0
        %1890 = vmatprep.subr.bf16.mxu0 0
        %1891 = vmatpush1.bf16.msra.mxu0 0
        %1892 = vmatprep.subr.bf16.mxu0 0
        %1893 = vmatpush1.bf16.msra.mxu0 0
        %1894 = vmatprep.subr.bf16.mxu0 0
        %1895 = vmatpush1.bf16.msra.mxu0 0
        %1896 = vmatprep.subr.bf16.mxu0 0
        %1897 = vmatpush1.bf16.msra.mxu0 0
        %1898 = vmatprep.subr.bf16.mxu0 0
        %1899 = vmatpush1.bf16.msra.mxu0 0
        %1900 = vmatprep.mubr.bf16.mxu0 0
        %1901 = vmatmul.mubr.bf16.gmra.mrb[0].mxu0 %v693
        %v1902 = vpop.f32.mrb[0].mxu0
        %v1903 = vadd.f32 0.0, %v1902
        %v1904 = vpop.f32.mrb[0].mxu0
        %v1905 = vpop.f32.mrb[0].mxu0
        %v1906 = vadd.f32 0.0, %v1905
        %v1907 = vpop.f32.mrb[0].mxu0
        %1908 = vmatprep.mubr.bf16.mxu0 0
        %1909 = vmatmul.mubr.bf16.gmra.mrb[0].mxu0 %v696
        %v1910 = vpop.f32.mrb[0].mxu0
        %v1911 = vadd.f32 0.0, %v1910
        %v1912 = vpop.f32.mrb[0].mxu0
        %v1913 = vpop.f32.mrb[0].mxu0
        %v1914 = vadd.f32 0.0, %v1913
        %v1915 = vpop.f32.mrb[0].mxu0
        %1916 = vmatprep.mubr.bf16.mxu0 0
        %1917 = vmatmul.mubr.bf16.gmra.mrb[0].mxu0 %v699
        %v1918 = vpop.f32.mrb[0].mxu0
        %v1919 = vadd.f32 0.0, %v1918
        %v1920 = vpop.f32.mrb[0].mxu0
        %v1921 = vpop.f32.mrb[0].mxu0
        %v1922 = vadd.f32 0.0, %v1921
        %v1923 = vpop.f32.mrb[0].mxu0
        %1924 = vmatprep.mubr.bf16.mxu0 0
        %1925 = vmatmul.mubr.bf16.gmra.mrb[0].mxu0 %v702
        %v1926 = vpop.f32.mrb[0].mxu0
        %v1927 = vadd.f32 0.0, %v1926
        %v1928 = vpop.f32.mrb[0].mxu0
        %v1929 = vpop.f32.mrb[0].mxu0
        %v1930 = vadd.f32 0.0, %v1929
        %v1931 = vpop.f32.mrb[0].mxu0
        %1932 = vmatprep.mubr.bf16.mxu0 0
        %1933 = vmatmul.mubr.bf16.gmra.mrb[0].mxu0 %v705
        %v1934 = vpop.f32.mrb[0].mxu0
        %v1935 = vadd.f32 0.0, %v1934
        %v1936 = vpop.f32.mrb[0].mxu0
        %v1937 = vpop.f32.mrb[0].mxu0
        %v1938 = vadd.f32 0.0, %v1937
        %v1939 = vpop.f32.mrb[0].mxu0
        %1940 = vmatprep.mubr.bf16.mxu0 0
        %1941 = vmatmul.mubr.bf16.gmra.mrb[0].mxu0 %v708
        %v1942 = vpop.f32.mrb[0].mxu0
        %v1943 = vadd.f32 0.0, %v1942
        %v1944 = vpop.f32.mrb[0].mxu0
        %v1945 = vpop.f32.mrb[0].mxu0
        %v1946 = vadd.f32 0.0, %v1945
        %v1947 = vpop.f32.mrb[0].mxu0
        %1948 = vmatprep.mubr.bf16.mxu0 0
        %1949 = vmatmul.mubr.bf16.gmra.mrb[0].mxu0 %v711
        %v1950 = vpop.f32.mrb[0].mxu0
        %v1951 = vadd.f32 0.0, %v1950
        %v1952 = vpop.f32.mrb[0].mxu0
        %v1953 = vpop.f32.mrb[0].mxu0
        %v1954 = vadd.f32 0.0, %v1953
        %v1955 = vpop.f32.mrb[0].mxu0
        %1956 = vmatprep.mubr.bf16.mxu0 0
        %1957 = vmatmul.mubr.bf16.gmra.mrb[0].mxu0 %v714
        %v1958 = vpop.f32.mrb[0].mxu0
        %v1959 = vadd.f32 0.0, %v1958
        %v1960 = vpop.f32.mrb[0].mxu0
        %v1961 = vpop.f32.mrb[0].mxu0
        %v1962 = vadd.f32 0.0, %v1961
        %v1963 = vpop.f32.mrb[0].mxu0
        %1964 = vmatprep.mubr.bf16.mxu0 0
        %1965 = vmatmul.mubr.bf16.gmra.mrb[0].mxu0 %v717
        %v1966 = vpop.f32.mrb[0].mxu0
        %v1967 = vadd.f32 0.0, %v1966
        %v1968 = vpop.f32.mrb[0].mxu0
        %v1969 = vpop.f32.mrb[0].mxu0
        %v1970 = vadd.f32 0.0, %v1969
        %v1971 = vpop.f32.mrb[0].mxu0
        %1972 = vmatprep.mubr.bf16.mxu0 0
        %1973 = vmatmul.mubr.bf16.gmra.mrb[0].mxu0 %v720
        %v1974 = vpop.f32.mrb[0].mxu0
        %v1975 = vadd.f32 0.0, %v1974
        %v1976 = vpop.f32.mrb[0].mxu0
        %v1977 = vpop.f32.mrb[0].mxu0
        %v1978 = vadd.f32 0.0, %v1977
        %v1979 = vpop.f32.mrb[0].mxu0
        %1980 = vmatprep.mubr.bf16.mxu0 0
        %1981 = vmatmul.mubr.bf16.gmra.mrb[0].mxu0 %v723
        %v1982 = vpop.f32.mrb[0].mxu0
        %v1983 = vadd.f32 0.0, %v1982
        %v1984 = vpop.f32.mrb[0].mxu0
        %v1985 = vpop.f32.mrb[0].mxu0
        %v1986 = vadd.f32 0.0, %v1985
        %v1987 = vpop.f32.mrb[0].mxu0
        %1988 = vmatprep.mubr.bf16.mxu0 0
        %1989 = vmatmul.mubr.bf16.gmra.mrb[0].mxu0 %v726
        %v1990 = vpop.f32.mrb[0].mxu0
        %v1991 = vadd.f32 0.0, %v1990
        %v1992 = vpop.f32.mrb[0].mxu0
        %v1993 = vpop.f32.mrb[0].mxu0
        %v1994 = vadd.f32 0.0, %v1993
        %v1995 = vpop.f32.mrb[0].mxu0
        %1996 = vmatprep.mubr.bf16.mxu0 0
        %1997 = vmatmul.mubr.bf16.gmra.mrb[0].mxu0 %v729
        %v1998 = vpop.f32.mrb[0].mxu0
        %v1999 = vadd.f32 0.0, %v1998
        %v2000 = vpop.f32.mrb[0].mxu0
        %v2001 = vpop.f32.mrb[0].mxu0
        %v2002 = vadd.f32 0.0, %v2001
        %v2003 = vpop.f32.mrb[0].mxu0
        %2004 = vmatprep.mubr.bf16.mxu0 0
        %2005 = vmatmul.mubr.bf16.gmra.mrb[0].mxu0 %v732
        %v2006 = vpop.f32.mrb[0].mxu0
        %v2007 = vadd.f32 0.0, %v2006
        %v2008 = vpop.f32.mrb[0].mxu0
        %v2009 = vpop.f32.mrb[0].mxu0
        %v2010 = vadd.f32 0.0, %v2009
        %v2011 = vpop.f32.mrb[0].mxu0
        %2012 = vmatprep.mubr.bf16.mxu0 0
        %2013 = vmatmul.mubr.bf16.gmra.mrb[0].mxu0 %v735
        %v2014 = vpop.f32.mrb[0].mxu0
        %v2015 = vadd.f32 0.0, %v2014
        %v2016 = vpop.f32.mrb[0].mxu0
        %v2017 = vpop.f32.mrb[0].mxu0
        %v2018 = vadd.f32 0.0, %v2017
        %v2019 = vpop.f32.mrb[0].mxu0
        %2020 = vmatprep.mubr.bf16.mxu0 0
        %2021 = vmatmul.mubr.bf16.gmra.mrb[0].mxu0 %v1866
        %v2022 = vpop.f32.mrb[0].mxu0
        %v2023 = vadd.f32 0.0, %v2022
        %v2024 = vpop.f32.mrb[0].mxu0
        %v2025 = vpop.f32.mrb[0].mxu0
        %v2026 = vadd.f32 0.0, %v2025
        %v2027 = vpop.f32.mrb[0].mxu0
        %2028 = vdwg.mxu0
        %v2029 = vadd.f32 %v1798, %v1903
        %v2030 = vadd.f32 %v1799, %v1906
        %v2031 = vadd.f32 %v1800, %v1911
        %v2032 = vadd.f32 %v1801, %v1914
        %v2033 = vadd.f32 %v1802, %v1919
        %v2034 = vadd.f32 %v1803, %v1922
        %v2035 = vadd.f32 %v1804, %v1927
        %v2036 = vadd.f32 %v1805, %v1930
        %v2037 = vadd.f32 %v1806, %v1935
        %v2038 = vadd.f32 %v1807, %v1938
        %v2039 = vadd.f32 %v1808, %v1943
        %v2040 = vadd.f32 %v1809, %v1946
        %v2041 = vadd.f32 %v1810, %v1951
        %v2042 = vadd.f32 %v1811, %v1954
        %v2043 = vadd.f32 %v1812, %v1959
        %v2044 = vadd.f32 %v1813, %v1962
        %v2045 = vadd.f32 %v1814, %v1967
        %v2046 = vadd.f32 %v1815, %v1970
        %v2047 = vadd.f32 %v1816, %v1975
        %v2048 = vadd.f32 %v1817, %v1978
        %v2049 = vadd.f32 %v1818, %v1983
        %v2050 = vadd.f32 %v1819, %v1986
        %v2051 = vadd.f32 %v1820, %v1991
        %v2052 = vadd.f32 %v1821, %v1994
        %v2053 = vadd.f32 %v1822, %v1999
        %v2054 = vadd.f32 %v1823, %v2002
        %v2055 = vadd.f32 %v1824, %v2007
        %v2056 = vadd.f32 %v1825, %v2010
        %v2057 = vadd.f32 %v1826, %v2015
        %v2058 = vadd.f32 %v1827, %v2018
        %v2059 = vadd.f32 %v1828, %v2023
        %v2060 = vadd.f32 %v1829, %v2026
        %v2062 = vrot.slane %v237, 5
        %v2063 = vrot.slane %v2062, 4
        %v2064 = vrot.slane %v238, 5
        %v2065 = vsel %vm1211, %v2063, %v2064
        %v2066 = vrot.slane %v2064, 4
        %v2067 = vrot.slane %v239, 5
        %v2068 = vsel %vm1211, %v2066, %v2067
        %v2069 = vld [vmem:[%s1 + $0x28] sm:$0xf]
        %v2070 = vld [vmem:[%s1 + $0x2c] sm:$0xf]
        %v2071 = vunpack.c.l.b16 %v2065
        %v2072 = vunpack.c.l.b16 %v2068
        %v2073 = vpack.c.b16 %v2072, %v2071
        %v2076 = vunpack.c.l.b16 %v2069
        %v2077 = vunpack.c.l.b16 %v2070
        %v2078 = vpack.c.b16 %v2077, %v2076
        %v2081 = vsel %vm688, %v2073, 0
        %2083 = vmatprep.subr.bf16.mxu0 0
        %2084 = vmatpush1.bf16.msra.mxu0 %v2078
        %2085 = vmatprep.subr.bf16.mxu0 0
        %2086 = vmatpush1.bf16.msra.mxu0 0
        %2087 = vmatprep.subr.bf16.mxu0 0
        %2088 = vmatpush1.bf16.msra.mxu0 0
        %2089 = vmatprep.subr.bf16.mxu0 0
        %2090 = vmatpush1.bf16.msra.mxu0 0
        %2091 = vmatprep.subr.bf16.mxu0 0
        %2092 = vmatpush1.bf16.msra.mxu0 0
        %2093 = vmatprep.subr.bf16.mxu0 0
        %2094 = vmatpush1.bf16.msra.mxu0 0
        %2095 = vmatprep.subr.bf16.mxu0 0
        %2096 = vmatpush1.bf16.msra.mxu0 0
        %2097 = vmatprep.subr.bf16.mxu0 0
        %2098 = vmatpush1.bf16.msra.mxu0 0
        %2099 = vmatprep.subr.bf16.mxu0 0
        %2100 = vmatpush1.bf16.msra.mxu0 0
        %2101 = vmatprep.subr.bf16.mxu0 0
        %2102 = vmatpush1.bf16.msra.mxu0 0
        %2103 = vmatprep.subr.bf16.mxu0 0
        %2104 = vmatpush1.bf16.msra.mxu0 0
        %2105 = vmatprep.subr.bf16.mxu0 0
        %2106 = vmatpush1.bf16.msra.mxu0 0
        %2107 = vmatprep.subr.bf16.mxu0 0
        %2108 = vmatpush1.bf16.msra.mxu0 0
        %2109 = vmatprep.subr.bf16.mxu0 0
        %2110 = vmatpush1.bf16.msra.mxu0 0
        %2111 = vmatprep.subr.bf16.mxu0 0
        %2112 = vmatpush1.bf16.msra.mxu0 0
        %2113 = vmatprep.subr.bf16.mxu0 0
        %2114 = vmatpush1.bf16.msra.mxu0 0
        %2115 = vmatprep.mubr.bf16.mxu0 0
        %2116 = vmatmul.mubr.bf16.gmra.mrb[0].mxu0 %v1384
        %v2117 = vpop.f32.mrb[0].mxu0
        %v2118 = vadd.f32 0.0, %v2117
        %v2119 = vpop.f32.mrb[0].mxu0
        %v2120 = vpop.f32.mrb[0].mxu0
        %v2121 = vadd.f32 0.0, %v2120
        %v2122 = vpop.f32.mrb[0].mxu0
        %2123 = vmatprep.mubr.bf16.mxu0 0
        %2124 = vmatmul.mubr.bf16.gmra.mrb[0].mxu0 %v1387
        %v2125 = vpop.f32.mrb[0].mxu0
        %v2126 = vadd.f32 0.0, %v2125
        %v2127 = vpop.f32.mrb[0].mxu0
        %v2128 = vpop.f32.mrb[0].mxu0
        %v2129 = vadd.f32 0.0, %v2128
        %v2130 = vpop.f32.mrb[0].mxu0
        %2131 = vmatprep.mubr.bf16.mxu0 0
        %2132 = vmatmul.mubr.bf16.gmra.mrb[0].mxu0 %v1390
        %v2133 = vpop.f32.mrb[0].mxu0
        %v2134 = vadd.f32 0.0, %v2133
        %v2135 = vpop.f32.mrb[0].mxu0
        %v2136 = vpop.f32.mrb[0].mxu0
        %v2137 = vadd.f32 0.0, %v2136
        %v2138 = vpop.f32.mrb[0].mxu0
        %2139 = vmatprep.mubr.bf16.mxu0 0
        %2140 = vmatmul.mubr.bf16.gmra.mrb[0].mxu0 %v1393
        %v2141 = vpop.f32.mrb[0].mxu0
        %v2142 = vadd.f32 0.0, %v2141
        %v2143 = vpop.f32.mrb[0].mxu0
        %v2144 = vpop.f32.mrb[0].mxu0
        %v2145 = vadd.f32 0.0, %v2144
        %v2146 = vpop.f32.mrb[0].mxu0
        %2147 = vmatprep.mubr.bf16.mxu0 0
        %2148 = vmatmul.mubr.bf16.gmra.mrb[0].mxu0 %v1396
        %v2149 = vpop.f32.mrb[0].mxu0
        %v2150 = vadd.f32 0.0, %v2149
        %v2151 = vpop.f32.mrb[0].mxu0
        %v2152 = vpop.f32.mrb[0].mxu0
        %v2153 = vadd.f32 0.0, %v2152
        %v2154 = vpop.f32.mrb[0].mxu0
        %2155 = vmatprep.mubr.bf16.mxu0 0
        %2156 = vmatmul.mubr.bf16.gmra.mrb[0].mxu0 %v1399
        %v2157 = vpop.f32.mrb[0].mxu0
        %v2158 = vadd.f32 0.0, %v2157
        %v2159 = vpop.f32.mrb[0].mxu0
        %v2160 = vpop.f32.mrb[0].mxu0
        %v2161 = vadd.f32 0.0, %v2160
        %v2162 = vpop.f32.mrb[0].mxu0
        %2163 = vmatprep.mubr.bf16.mxu0 0
        %2164 = vmatmul.mubr.bf16.gmra.mrb[0].mxu0 %v1402
        %v2165 = vpop.f32.mrb[0].mxu0
        %v2166 = vadd.f32 0.0, %v2165
        %v2167 = vpop.f32.mrb[0].mxu0
        %v2168 = vpop.f32.mrb[0].mxu0
        %v2169 = vadd.f32 0.0, %v2168
        %v2170 = vpop.f32.mrb[0].mxu0
        %2171 = vmatprep.mubr.bf16.mxu0 0
        %2172 = vmatmul.mubr.bf16.gmra.mrb[0].mxu0 %v1405
        %v2173 = vpop.f32.mrb[0].mxu0
        %v2174 = vadd.f32 0.0, %v2173
        %v2175 = vpop.f32.mrb[0].mxu0
        %v2176 = vpop.f32.mrb[0].mxu0
        %v2177 = vadd.f32 0.0, %v2176
        %v2178 = vpop.f32.mrb[0].mxu0
        %2179 = vmatprep.mubr.bf16.mxu0 0
        %2180 = vmatmul.mubr.bf16.gmra.mrb[0].mxu0 %v1408
        %v2181 = vpop.f32.mrb[0].mxu0
        %v2182 = vadd.f32 0.0, %v2181
        %v2183 = vpop.f32.mrb[0].mxu0
        %v2184 = vpop.f32.mrb[0].mxu0
        %v2185 = vadd.f32 0.0, %v2184
        %v2186 = vpop.f32.mrb[0].mxu0
        %2187 = vmatprep.mubr.bf16.mxu0 0
        %2188 = vmatmul.mubr.bf16.gmra.mrb[0].mxu0 %v1411
        %v2189 = vpop.f32.mrb[0].mxu0
        %v2190 = vadd.f32 0.0, %v2189
        %v2191 = vpop.f32.mrb[0].mxu0
        %v2192 = vpop.f32.mrb[0].mxu0
        %v2193 = vadd.f32 0.0, %v2192
        %v2194 = vpop.f32.mrb[0].mxu0
        %2195 = vmatprep.mubr.bf16.mxu0 0
        %2196 = vmatmul.mubr.bf16.gmra.mrb[0].mxu0 %v1414
        %v2197 = vpop.f32.mrb[0].mxu0
        %v2198 = vadd.f32 0.0, %v2197
        %v2199 = vpop.f32.mrb[0].mxu0
        %v2200 = vpop.f32.mrb[0].mxu0
        %v2201 = vadd.f32 0.0, %v2200
        %v2202 = vpop.f32.mrb[0].mxu0
        %2203 = vmatprep.mubr.bf16.mxu0 0
        %2204 = vmatmul.mubr.bf16.gmra.mrb[0].mxu0 %v1417
        %v2205 = vpop.f32.mrb[0].mxu0
        %v2206 = vadd.f32 0.0, %v2205
        %v2207 = vpop.f32.mrb[0].mxu0
        %v2208 = vpop.f32.mrb[0].mxu0
        %v2209 = vadd.f32 0.0, %v2208
        %v2210 = vpop.f32.mrb[0].mxu0
        %2211 = vmatprep.mubr.bf16.mxu0 0
        %2212 = vmatmul.mubr.bf16.gmra.mrb[0].mxu0 %v1420
        %v2213 = vpop.f32.mrb[0].mxu0
        %v2214 = vadd.f32 0.0, %v2213
        %v2215 = vpop.f32.mrb[0].mxu0
        %v2216 = vpop.f32.mrb[0].mxu0
        %v2217 = vadd.f32 0.0, %v2216
        %v2218 = vpop.f32.mrb[0].mxu0
        %2219 = vmatprep.mubr.bf16.mxu0 0
        %2220 = vmatmul.mubr.bf16.gmra.mrb[0].mxu0 %v1423
        %v2221 = vpop.f32.mrb[0].mxu0
        %v2222 = vadd.f32 0.0, %v2221
        %v2223 = vpop.f32.mrb[0].mxu0
        %v2224 = vpop.f32.mrb[0].mxu0
        %v2225 = vadd.f32 0.0, %v2224
        %v2226 = vpop.f32.mrb[0].mxu0
        %2227 = vmatprep.mubr.bf16.mxu0 0
        %2228 = vmatmul.mubr.bf16.gmra.mrb[0].mxu0 %v1426
        %v2229 = vpop.f32.mrb[0].mxu0
        %v2230 = vadd.f32 0.0, %v2229
        %v2231 = vpop.f32.mrb[0].mxu0
        %v2232 = vpop.f32.mrb[0].mxu0
        %v2233 = vadd.f32 0.0, %v2232
        %v2234 = vpop.f32.mrb[0].mxu0
        %2235 = vmatprep.mubr.bf16.mxu0 0
        %2236 = vmatmul.mubr.bf16.gmra.mrb[0].mxu0 %v2081
        %v2237 = vpop.f32.mrb[0].mxu0
        %v2238 = vadd.f32 0.0, %v2237
        %v2239 = vpop.f32.mrb[0].mxu0
        %v2240 = vpop.f32.mrb[0].mxu0
        %v2241 = vadd.f32 0.0, %v2240
        %v2242 = vpop.f32.mrb[0].mxu0
        %2243 = vdwg.mxu0
        %v2244 = vadd.f32 %v2029, %v2118
        %v2245 = vadd.f32 %v2030, %v2121
        %v2246 = vadd.f32 %v2031, %v2126
        %v2247 = vadd.f32 %v2032, %v2129
        %v2248 = vadd.f32 %v2033, %v2134
        %v2249 = vadd.f32 %v2034, %v2137
        %v2250 = vadd.f32 %v2035, %v2142
        %v2251 = vadd.f32 %v2036, %v2145
        %v2252 = vadd.f32 %v2037, %v2150
        %v2253 = vadd.f32 %v2038, %v2153
        %v2254 = vadd.f32 %v2039, %v2158
        %v2255 = vadd.f32 %v2040, %v2161
        %v2256 = vadd.f32 %v2041, %v2166
        %v2257 = vadd.f32 %v2042, %v2169
        %v2258 = vadd.f32 %v2043, %v2174
        %v2259 = vadd.f32 %v2044, %v2177
        %v2260 = vadd.f32 %v2045, %v2182
        %v2261 = vadd.f32 %v2046, %v2185
        %v2262 = vadd.f32 %v2047, %v2190
        %v2263 = vadd.f32 %v2048, %v2193
        %v2264 = vadd.f32 %v2049, %v2198
        %v2265 = vadd.f32 %v2050, %v2201
        %v2266 = vadd.f32 %v2051, %v2206
        %v2267 = vadd.f32 %v2052, %v2209
        %v2268 = vadd.f32 %v2053, %v2214
        %v2269 = vadd.f32 %v2054, %v2217
        %v2270 = vadd.f32 %v2055, %v2222
        %v2271 = vadd.f32 %v2056, %v2225
        %v2272 = vadd.f32 %v2057, %v2230
        %v2273 = vadd.f32 %v2058, %v2233
        %v2274 = vadd.f32 %v2059, %v2238
        %v2275 = vadd.f32 %v2060, %v2241
        %v2276 = vld [vmem:[%s1 + $0x30] sm:$0xf]
        %v2277 = vld [vmem:[%s1 + $0x34] sm:$0xf]
        %v2280 = vunpack.c.l.b16 %v240
        %v2281 = vunpack.c.l.b16 %v241
        %v2282 = vpack.c.b16 %v2281, %v2280
        %v2285 = vunpack.c.l.b16 %v2276
        %v2286 = vunpack.c.l.b16 %v2277
        %v2287 = vpack.c.b16 %v2286, %v2285
        %v2290 = vsel %vm688, %v2282, 0
        %2292 = vmatprep.subr.bf16.mxu0 0
        %2293 = vmatpush1.bf16.msra.mxu0 %v2287
        %2294 = vmatprep.subr.bf16.mxu0 0
        %2295 = vmatpush1.bf16.msra.mxu0 0
        %2296 = vmatprep.subr.bf16.mxu0 0
        %2297 = vmatpush1.bf16.msra.mxu0 0
        %2298 = vmatprep.subr.bf16.mxu0 0
        %2299 = vmatpush1.bf16.msra.mxu0 0
        %2300 = vmatprep.subr.bf16.mxu0 0
        %2301 = vmatpush1.bf16.msra.mxu0 0
        %2302 = vmatprep.subr.bf16.mxu0 0
        %2303 = vmatpush1.bf16.msra.mxu0 0
        %2304 = vmatprep.subr.bf16.mxu0 0
        %2305 = vmatpush1.bf16.msra.mxu0 0
        %2306 = vmatprep.subr.bf16.mxu0 0
        %2307 = vmatpush1.bf16.msra.mxu0 0
        %2308 = vmatprep.subr.bf16.mxu0 0
        %2309 = vmatpush1.bf16.msra.mxu0 0
        %2310 = vmatprep.subr.bf16.mxu0 0
        %2311 = vmatpush1.bf16.msra.mxu0 0
        %2312 = vmatprep.subr.bf16.mxu0 0
        %2313 = vmatpush1.bf16.msra.mxu0 0
        %2314 = vmatprep.subr.bf16.mxu0 0
        %2315 = vmatpush1.bf16.msra.mxu0 0
        %2316 = vmatprep.subr.bf16.mxu0 0
        %2317 = vmatpush1.bf16.msra.mxu0 0
        %2318 = vmatprep.subr.bf16.mxu0 0
        %2319 = vmatpush1.bf16.msra.mxu0 0
        %2320 = vmatprep.subr.bf16.mxu0 0
        %2321 = vmatpush1.bf16.msra.mxu0 0
        %2322 = vmatprep.subr.bf16.mxu0 0
        %2323 = vmatpush1.bf16.msra.mxu0 0
        %2324 = vmatprep.mubr.bf16.mxu0 0
        %2325 = vmatmul.mubr.bf16.gmra.mrb[0].mxu0 %v991
        %v2326 = vpop.f32.mrb[0].mxu0
        %v2327 = vadd.f32 0.0, %v2326
        %v2328 = vpop.f32.mrb[0].mxu0
        %v2329 = vpop.f32.mrb[0].mxu0
        %v2330 = vadd.f32 0.0, %v2329
        %v2331 = vpop.f32.mrb[0].mxu0
        %2332 = vmatprep.mubr.bf16.mxu0 0
        %2333 = vmatmul.mubr.bf16.gmra.mrb[0].mxu0 %v994
        %v2334 = vpop.f32.mrb[0].mxu0
        %v2335 = vadd.f32 0.0, %v2334
        %v2336 = vpop.f32.mrb[0].mxu0
        %v2337 = vpop.f32.mrb[0].mxu0
        %v2338 = vadd.f32 0.0, %v2337
        %v2339 = vpop.f32.mrb[0].mxu0
        %2340 = vmatprep.mubr.bf16.mxu0 0
        %2341 = vmatmul.mubr.bf16.gmra.mrb[0].mxu0 %v997
        %v2342 = vpop.f32.mrb[0].mxu0
        %v2343 = vadd.f32 0.0, %v2342
        %v2344 = vpop.f32.mrb[0].mxu0
        %v2345 = vpop.f32.mrb[0].mxu0
        %v2346 = vadd.f32 0.0, %v2345
        %v2347 = vpop.f32.mrb[0].mxu0
        %2348 = vmatprep.mubr.bf16.mxu0 0
        %2349 = vmatmul.mubr.bf16.gmra.mrb[0].mxu0 %v1000
        %v2350 = vpop.f32.mrb[0].mxu0
        %v2351 = vadd.f32 0.0, %v2350
        %v2352 = vpop.f32.mrb[0].mxu0
        %v2353 = vpop.f32.mrb[0].mxu0
        %v2354 = vadd.f32 0.0, %v2353
        %v2355 = vpop.f32.mrb[0].mxu0
        %2356 = vmatprep.mubr.bf16.mxu0 0
        %2357 = vmatmul.mubr.bf16.gmra.mrb[0].mxu0 %v1003
        %v2358 = vpop.f32.mrb[0].mxu0
        %v2359 = vadd.f32 0.0, %v2358
        %v2360 = vpop.f32.mrb[0].mxu0
        %v2361 = vpop.f32.mrb[0].mxu0
        %v2362 = vadd.f32 0.0, %v2361
        %v2363 = vpop.f32.mrb[0].mxu0
        %2364 = vmatprep.mubr.bf16.mxu0 0
        %2365 = vmatmul.mubr.bf16.gmra.mrb[0].mxu0 %v1006
        %v2366 = vpop.f32.mrb[0].mxu0
        %v2367 = vadd.f32 0.0, %v2366
        %v2368 = vpop.f32.mrb[0].mxu0
        %v2369 = vpop.f32.mrb[0].mxu0
        %v2370 = vadd.f32 0.0, %v2369
        %v2371 = vpop.f32.mrb[0].mxu0
        %2372 = vmatprep.mubr.bf16.mxu0 0
        %2373 = vmatmul.mubr.bf16.gmra.mrb[0].mxu0 %v1009
        %v2374 = vpop.f32.mrb[0].mxu0
        %v2375 = vadd.f32 0.0, %v2374
        %v2376 = vpop.f32.mrb[0].mxu0
        %v2377 = vpop.f32.mrb[0].mxu0
        %v2378 = vadd.f32 0.0, %v2377
        %v2379 = vpop.f32.mrb[0].mxu0
        %2380 = vmatprep.mubr.bf16.mxu0 0
        %2381 = vmatmul.mubr.bf16.gmra.mrb[0].mxu0 %v1012
        %v2382 = vpop.f32.mrb[0].mxu0
        %v2383 = vadd.f32 0.0, %v2382
        %v2384 = vpop.f32.mrb[0].mxu0
        %v2385 = vpop.f32.mrb[0].mxu0
        %v2386 = vadd.f32 0.0, %v2385
        %v2387 = vpop.f32.mrb[0].mxu0
        %2388 = vmatprep.mubr.bf16.mxu0 0
        %2389 = vmatmul.mubr.bf16.gmra.mrb[0].mxu0 %v1015
        %v2390 = vpop.f32.mrb[0].mxu0
        %v2391 = vadd.f32 0.0, %v2390
        %v2392 = vpop.f32.mrb[0].mxu0
        %v2393 = vpop.f32.mrb[0].mxu0
        %v2394 = vadd.f32 0.0, %v2393
        %v2395 = vpop.f32.mrb[0].mxu0
        %2396 = vmatprep.mubr.bf16.mxu0 0
        %2397 = vmatmul.mubr.bf16.gmra.mrb[0].mxu0 %v1018
        %v2398 = vpop.f32.mrb[0].mxu0
        %v2399 = vadd.f32 0.0, %v2398
        %v2400 = vpop.f32.mrb[0].mxu0
        %v2401 = vpop.f32.mrb[0].mxu0
        %v2402 = vadd.f32 0.0, %v2401
        %v2403 = vpop.f32.mrb[0].mxu0
        %2404 = vmatprep.mubr.bf16.mxu0 0
        %2405 = vmatmul.mubr.bf16.gmra.mrb[0].mxu0 %v1021
        %v2406 = vpop.f32.mrb[0].mxu0
        %v2407 = vadd.f32 0.0, %v2406
        %v2408 = vpop.f32.mrb[0].mxu0
        %v2409 = vpop.f32.mrb[0].mxu0
        %v2410 = vadd.f32 0.0, %v2409
        %v2411 = vpop.f32.mrb[0].mxu0
        %2412 = vmatprep.mubr.bf16.mxu0 0
        %2413 = vmatmul.mubr.bf16.gmra.mrb[0].mxu0 %v1024
        %v2414 = vpop.f32.mrb[0].mxu0
        %v2415 = vadd.f32 0.0, %v2414
        %v2416 = vpop.f32.mrb[0].mxu0
        %v2417 = vpop.f32.mrb[0].mxu0
        %v2418 = vadd.f32 0.0, %v2417
        %v2419 = vpop.f32.mrb[0].mxu0
        %2420 = vmatprep.mubr.bf16.mxu0 0
        %2421 = vmatmul.mubr.bf16.gmra.mrb[0].mxu0 %v1027
        %v2422 = vpop.f32.mrb[0].mxu0
        %v2423 = vadd.f32 0.0, %v2422
        %v2424 = vpop.f32.mrb[0].mxu0
        %v2425 = vpop.f32.mrb[0].mxu0
        %v2426 = vadd.f32 0.0, %v2425
        %v2427 = vpop.f32.mrb[0].mxu0
        %2428 = vmatprep.mubr.bf16.mxu0 0
        %2429 = vmatmul.mubr.bf16.gmra.mrb[0].mxu0 %v1030
        %v2430 = vpop.f32.mrb[0].mxu0
        %v2431 = vadd.f32 0.0, %v2430
        %v2432 = vpop.f32.mrb[0].mxu0
        %v2433 = vpop.f32.mrb[0].mxu0
        %v2434 = vadd.f32 0.0, %v2433
        %v2435 = vpop.f32.mrb[0].mxu0
        %2436 = vmatprep.mubr.bf16.mxu0 0
        %2437 = vmatmul.mubr.bf16.gmra.mrb[0].mxu0 %v1635
        %v2438 = vpop.f32.mrb[0].mxu0
        %v2439 = vadd.f32 0.0, %v2438
        %v2440 = vpop.f32.mrb[0].mxu0
        %v2441 = vpop.f32.mrb[0].mxu0
        %v2442 = vadd.f32 0.0, %v2441
        %v2443 = vpop.f32.mrb[0].mxu0
        %2444 = vmatprep.mubr.bf16.mxu0 0
        %2445 = vmatmul.mubr.bf16.gmra.mrb[0].mxu0 %v2290
        %v2446 = vpop.f32.mrb[0].mxu0
        %v2447 = vadd.f32 0.0, %v2446
        %v2448 = vpop.f32.mrb[0].mxu0
        %v2449 = vpop.f32.mrb[0].mxu0
        %v2450 = vadd.f32 0.0, %v2449
        %v2451 = vpop.f32.mrb[0].mxu0
        %2452 = vdwg.mxu0
        %v2453 = vadd.f32 %v2244, %v2327
        %v2454 = vadd.f32 %v2245, %v2330
        %v2455 = vadd.f32 %v2246, %v2335
        %v2456 = vadd.f32 %v2247, %v2338
        %v2457 = vadd.f32 %v2248, %v2343
        %v2458 = vadd.f32 %v2249, %v2346
        %v2459 = vadd.f32 %v2250, %v2351
        %v2460 = vadd.f32 %v2251, %v2354
        %v2461 = vadd.f32 %v2252, %v2359
        %v2462 = vadd.f32 %v2253, %v2362
        %v2463 = vadd.f32 %v2254, %v2367
        %v2464 = vadd.f32 %v2255, %v2370
        %v2465 = vadd.f32 %v2256, %v2375
        %v2466 = vadd.f32 %v2257, %v2378
        %v2467 = vadd.f32 %v2258, %v2383
        %v2468 = vadd.f32 %v2259, %v2386
        %v2469 = vadd.f32 %v2260, %v2391
        %v2470 = vadd.f32 %v2261, %v2394
        %v2471 = vadd.f32 %v2262, %v2399
        %v2472 = vadd.f32 %v2263, %v2402
        %v2473 = vadd.f32 %v2264, %v2407
        %v2474 = vadd.f32 %v2265, %v2410
        %v2475 = vadd.f32 %v2266, %v2415
        %v2476 = vadd.f32 %v2267, %v2418
        %v2477 = vadd.f32 %v2268, %v2423
        %v2478 = vadd.f32 %v2269, %v2426
        %v2479 = vadd.f32 %v2270, %v2431
        %v2480 = vadd.f32 %v2271, %v2434
        %v2481 = vadd.f32 %v2272, %v2439
        %v2482 = vadd.f32 %v2273, %v2442
        %v2483 = vadd.f32 %v2274, %v2447
        %v2484 = vadd.f32 %v2275, %v2450
        %v2486 = vshrl.u32 %v240, 16
        %v2488 = vrot.slane %v2486, 4
        %v2489 = vshll.u32 %v240, 16
        %v2491 = vrot.slane %v2489, 5
        %v2492 = vor.u32 %v2488, %v2491
        %v2493 = vrot.slane %v2492, 4
        %v2495 = vshll.u32 %v241, 16
        %v2497 = vrot.slane %v2495, 5
        %v2498 = vsel %vm247, %v2493, %v2497
        %v2499 = vshrl.u32 %v241, 16
        %v2501 = vrot.slane %v2499, 4
        %v2502 = vor.u32 %v2501, %v2497
        %v2503 = vrot.slane %v2502, 4
        %v2505 = vshll.u32 %v242, 16
        %v2507 = vrot.slane %v2505, 5
        %v2508 = vsel %vm247, %v2503, %v2507
        %v2509 = vld [vmem:[%s1 + $0x38] sm:$0xf]
        %v2510 = vld [vmem:[%s1 + $0x3c] sm:$0xf]
        %v2511 = vunpack.c.l.b16 %v2498
        %v2512 = vunpack.c.l.b16 %v2508
        %v2513 = vpack.c.b16 %v2512, %v2511
        %v2516 = vunpack.c.l.b16 %v2509
        %v2517 = vunpack.c.l.b16 %v2510
        %v2518 = vpack.c.b16 %v2517, %v2516
        %v2521 = vsel %vm688, %v2513, 0
        %2523 = vmatprep.subr.bf16.mxu0 0
        %2524 = vmatpush1.bf16.msra.mxu0 %v2518
        %2525 = vmatprep.subr.bf16.mxu0 0
        %2526 = vmatpush1.bf16.msra.mxu0 0
        %2527 = vmatprep.subr.bf16.mxu0 0
        %2528 = vmatpush1.bf16.msra.mxu0 0
        %2529 = vmatprep.subr.bf16.mxu0 0
        %2530 = vmatpush1.bf16.msra.mxu0 0
        %2531 = vmatprep.subr.bf16.mxu0 0
        %2532 = vmatpush1.bf16.msra.mxu0 0
        %2533 = vmatprep.subr.bf16.mxu0 0
        %2534 = vmatpush1.bf16.msra.mxu0 0
        %2535 = vmatprep.subr.bf16.mxu0 0
        %2536 = vmatpush1.bf16.msra.mxu0 0
        %2537 = vmatprep.subr.bf16.mxu0 0
        %2538 = vmatpush1.bf16.msra.mxu0 0
        %2539 = vmatprep.subr.bf16.mxu0 0
        %2540 = vmatpush1.bf16.msra.mxu0 0
        %2541 = vmatprep.subr.bf16.mxu0 0
        %2542 = vmatpush1.bf16.msra.mxu0 0
        %2543 = vmatprep.subr.bf16.mxu0 0
        %2544 = vmatpush1.bf16.msra.mxu0 0
        %2545 = vmatprep.subr.bf16.mxu0 0
        %2546 = vmatpush1.bf16.msra.mxu0 0
        %2547 = vmatprep.subr.bf16.mxu0 0
        %2548 = vmatpush1.bf16.msra.mxu0 0
        %2549 = vmatprep.subr.bf16.mxu0 0
        %2550 = vmatpush1.bf16.msra.mxu0 0
        %2551 = vmatprep.subr.bf16.mxu0 0
        %2552 = vmatpush1.bf16.msra.mxu0 0
        %2553 = vmatprep.subr.bf16.mxu0 0
        %2554 = vmatpush1.bf16.msra.mxu0 0
        %2555 = vmatprep.mubr.bf16.mxu0 0
        %2556 = vmatmul.mubr.bf16.gmra.mrb[0].mxu0 %v696
        %v2557 = vpop.f32.mrb[0].mxu0
        %v2558 = vadd.f32 0.0, %v2557
        %v2559 = vpop.f32.mrb[0].mxu0
        %v2560 = vpop.f32.mrb[0].mxu0
        %v2561 = vadd.f32 0.0, %v2560
        %v2562 = vpop.f32.mrb[0].mxu0
        %2563 = vmatprep.mubr.bf16.mxu0 0
        %2564 = vmatmul.mubr.bf16.gmra.mrb[0].mxu0 %v699
        %v2565 = vpop.f32.mrb[0].mxu0
        %v2566 = vadd.f32 0.0, %v2565
        %v2567 = vpop.f32.mrb[0].mxu0
        %v2568 = vpop.f32.mrb[0].mxu0
        %v2569 = vadd.f32 0.0, %v2568
        %v2570 = vpop.f32.mrb[0].mxu0
        %2571 = vmatprep.mubr.bf16.mxu0 0
        %2572 = vmatmul.mubr.bf16.gmra.mrb[0].mxu0 %v702
        %v2573 = vpop.f32.mrb[0].mxu0
        %v2574 = vadd.f32 0.0, %v2573
        %v2575 = vpop.f32.mrb[0].mxu0
        %v2576 = vpop.f32.mrb[0].mxu0
        %v2577 = vadd.f32 0.0, %v2576
        %v2578 = vpop.f32.mrb[0].mxu0
        %2579 = vmatprep.mubr.bf16.mxu0 0
        %2580 = vmatmul.mubr.bf16.gmra.mrb[0].mxu0 %v705
        %v2581 = vpop.f32.mrb[0].mxu0
        %v2582 = vadd.f32 0.0, %v2581
        %v2583 = vpop.f32.mrb[0].mxu0
        %v2584 = vpop.f32.mrb[0].mxu0
        %v2585 = vadd.f32 0.0, %v2584
        %v2586 = vpop.f32.mrb[0].mxu0
        %2587 = vmatprep.mubr.bf16.mxu0 0
        %2588 = vmatmul.mubr.bf16.gmra.mrb[0].mxu0 %v708
        %v2589 = vpop.f32.mrb[0].mxu0
        %v2590 = vadd.f32 0.0, %v2589
        %v2591 = vpop.f32.mrb[0].mxu0
        %v2592 = vpop.f32.mrb[0].mxu0
        %v2593 = vadd.f32 0.0, %v2592
        %v2594 = vpop.f32.mrb[0].mxu0
        %2595 = vmatprep.mubr.bf16.mxu0 0
        %2596 = vmatmul.mubr.bf16.gmra.mrb[0].mxu0 %v711
        %v2597 = vpop.f32.mrb[0].mxu0
        %v2598 = vadd.f32 0.0, %v2597
        %v2599 = vpop.f32.mrb[0].mxu0
        %v2600 = vpop.f32.mrb[0].mxu0
        %v2601 = vadd.f32 0.0, %v2600
        %v2602 = vpop.f32.mrb[0].mxu0
        %2603 = vmatprep.mubr.bf16.mxu0 0
        %2604 = vmatmul.mubr.bf16.gmra.mrb[0].mxu0 %v714
        %v2605 = vpop.f32.mrb[0].mxu0
        %v2606 = vadd.f32 0.0, %v2605
        %v2607 = vpop.f32.mrb[0].mxu0
        %v2608 = vpop.f32.mrb[0].mxu0
        %v2609 = vadd.f32 0.0, %v2608
        %v2610 = vpop.f32.mrb[0].mxu0
        %2611 = vmatprep.mubr.bf16.mxu0 0
        %2612 = vmatmul.mubr.bf16.gmra.mrb[0].mxu0 %v717
        %v2613 = vpop.f32.mrb[0].mxu0
        %v2614 = vadd.f32 0.0, %v2613
        %v2615 = vpop.f32.mrb[0].mxu0
        %v2616 = vpop.f32.mrb[0].mxu0
        %v2617 = vadd.f32 0.0, %v2616
        %v2618 = vpop.f32.mrb[0].mxu0
        %2619 = vmatprep.mubr.bf16.mxu0 0
        %2620 = vmatmul.mubr.bf16.gmra.mrb[0].mxu0 %v720
        %v2621 = vpop.f32.mrb[0].mxu0
        %v2622 = vadd.f32 0.0, %v2621
        %v2623 = vpop.f32.mrb[0].mxu0
        %v2624 = vpop.f32.mrb[0].mxu0
        %v2625 = vadd.f32 0.0, %v2624
        %v2626 = vpop.f32.mrb[0].mxu0
        %2627 = vmatprep.mubr.bf16.mxu0 0
        %2628 = vmatmul.mubr.bf16.gmra.mrb[0].mxu0 %v723
        %v2629 = vpop.f32.mrb[0].mxu0
        %v2630 = vadd.f32 0.0, %v2629
        %v2631 = vpop.f32.mrb[0].mxu0
        %v2632 = vpop.f32.mrb[0].mxu0
        %v2633 = vadd.f32 0.0, %v2632
        %v2634 = vpop.f32.mrb[0].mxu0
        %2635 = vmatprep.mubr.bf16.mxu0 0
        %2636 = vmatmul.mubr.bf16.gmra.mrb[0].mxu0 %v726
        %v2637 = vpop.f32.mrb[0].mxu0
        %v2638 = vadd.f32 0.0, %v2637
        %v2639 = vpop.f32.mrb[0].mxu0
        %v2640 = vpop.f32.mrb[0].mxu0
        %v2641 = vadd.f32 0.0, %v2640
        %v2642 = vpop.f32.mrb[0].mxu0
        %2643 = vmatprep.mubr.bf16.mxu0 0
        %2644 = vmatmul.mubr.bf16.gmra.mrb[0].mxu0 %v729
        %v2645 = vpop.f32.mrb[0].mxu0
        %v2646 = vadd.f32 0.0, %v2645
        %v2647 = vpop.f32.mrb[0].mxu0
        %v2648 = vpop.f32.mrb[0].mxu0
        %v2649 = vadd.f32 0.0, %v2648
        %v2650 = vpop.f32.mrb[0].mxu0
        %2651 = vmatprep.mubr.bf16.mxu0 0
        %2652 = vmatmul.mubr.bf16.gmra.mrb[0].mxu0 %v732
        %v2653 = vpop.f32.mrb[0].mxu0
        %v2654 = vadd.f32 0.0, %v2653
        %v2655 = vpop.f32.mrb[0].mxu0
        %v2656 = vpop.f32.mrb[0].mxu0
        %v2657 = vadd.f32 0.0, %v2656
        %v2658 = vpop.f32.mrb[0].mxu0
        %2659 = vmatprep.mubr.bf16.mxu0 0
        %2660 = vmatmul.mubr.bf16.gmra.mrb[0].mxu0 %v735
        %v2661 = vpop.f32.mrb[0].mxu0
        %v2662 = vadd.f32 0.0, %v2661
        %v2663 = vpop.f32.mrb[0].mxu0
        %v2664 = vpop.f32.mrb[0].mxu0
        %v2665 = vadd.f32 0.0, %v2664
        %v2666 = vpop.f32.mrb[0].mxu0
        %2667 = vmatprep.mubr.bf16.mxu0 0
        %2668 = vmatmul.mubr.bf16.gmra.mrb[0].mxu0 %v1866
        %v2669 = vpop.f32.mrb[0].mxu0
        %v2670 = vadd.f32 0.0, %v2669
        %v2671 = vpop.f32.mrb[0].mxu0
        %v2672 = vpop.f32.mrb[0].mxu0
        %v2673 = vadd.f32 0.0, %v2672
        %v2674 = vpop.f32.mrb[0].mxu0
        %2675 = vmatprep.mubr.bf16.mxu0 0
        %2676 = vmatmul.mubr.bf16.gmra.mrb[0].mxu0 %v2521
        %v2677 = vpop.f32.mrb[0].mxu0
        %v2678 = vadd.f32 0.0, %v2677
        %v2679 = vpop.f32.mrb[0].mxu0
        %v2680 = vpop.f32.mrb[0].mxu0
        %v2681 = vadd.f32 0.0, %v2680
        %v2682 = vpop.f32.mrb[0].mxu0
        %2683 = vdwg.mxu0
        %v2684 = vadd.f32 %v2453, %v2558
        %v2685 = vadd.f32 %v2454, %v2561
        %v2686 = vadd.f32 %v2455, %v2566
        %v2687 = vadd.f32 %v2456, %v2569
        %v2688 = vadd.f32 %v2457, %v2574
        %v2689 = vadd.f32 %v2458, %v2577
        %v2690 = vadd.f32 %v2459, %v2582
        %v2691 = vadd.f32 %v2460, %v2585
        %v2692 = vadd.f32 %v2461, %v2590
        %v2693 = vadd.f32 %v2462, %v2593
        %v2694 = vadd.f32 %v2463, %v2598
        %v2695 = vadd.f32 %v2464, %v2601
        %v2696 = vadd.f32 %v2465, %v2606
        %v2697 = vadd.f32 %v2466, %v2609
        %v2698 = vadd.f32 %v2467, %v2614
        %v2699 = vadd.f32 %v2468, %v2617
        %v2700 = vadd.f32 %v2469, %v2622
        %v2701 = vadd.f32 %v2470, %v2625
        %v2702 = vadd.f32 %v2471, %v2630
        %v2703 = vadd.f32 %v2472, %v2633
        %v2704 = vadd.f32 %v2473, %v2638
        %v2705 = vadd.f32 %v2474, %v2641
        %v2706 = vadd.f32 %v2475, %v2646
        %v2707 = vadd.f32 %v2476, %v2649
        %v2708 = vadd.f32 %v2477, %v2654
        %v2709 = vadd.f32 %v2478, %v2657
        %v2710 = vadd.f32 %v2479, %v2662
        %v2711 = vadd.f32 %v2480, %v2665
        %v2712 = vadd.f32 %v2481, %v2670
        %v2713 = vadd.f32 %v2482, %v2673
        %v2714 = vadd.f32 %v2483, %v2678
        %v2715 = vadd.f32 %v2484, %v2681
        %v2717 = vrot.slane %v240, 5
        %v2718 = vrot.slane %v2717, 4
        %v2719 = vrot.slane %v241, 5
        %v2720 = vsel %vm1211, %v2718, %v2719
        %v2721 = vrot.slane %v2719, 4
        %v2722 = vrot.slane %v242, 5
        %v2723 = vsel %vm1211, %v2721, %v2722
        %v2724 = vld [vmem:[%s1 + $0x40] sm:$0xf]
        %v2725 = vld [vmem:[%s1 + $0x44] sm:$0xf]
        %v2726 = vunpack.c.l.b16 %v2720
        %v2727 = vunpack.c.l.b16 %v2723
        %v2728 = vpack.c.b16 %v2727, %v2726
        %v2731 = vunpack.c.l.b16 %v2724
        %v2732 = vunpack.c.l.b16 %v2725
        %v2733 = vpack.c.b16 %v2732, %v2731
        %v2736 = vsel %vm688, %v2728, 0
        %2738 = vmatprep.subr.bf16.mxu0 0
        %2739 = vmatpush1.bf16.msra.mxu0 %v2733
        %2740 = vmatprep.subr.bf16.mxu0 0
        %2741 = vmatpush1.bf16.msra.mxu0 0
        %2742 = vmatprep.subr.bf16.mxu0 0
        %2743 = vmatpush1.bf16.msra.mxu0 0
        %2744 = vmatprep.subr.bf16.mxu0 0
        %2745 = vmatpush1.bf16.msra.mxu0 0
        %2746 = vmatprep.subr.bf16.mxu0 0
        %2747 = vmatpush1.bf16.msra.mxu0 0
        %2748 = vmatprep.subr.bf16.mxu0 0
        %2749 = vmatpush1.bf16.msra.mxu0 0
        %2750 = vmatprep.subr.bf16.mxu0 0
        %2751 = vmatpush1.bf16.msra.mxu0 0
        %2752 = vmatprep.subr.bf16.mxu0 0
        %2753 = vmatpush1.bf16.msra.mxu0 0
        %2754 = vmatprep.subr.bf16.mxu0 0
        %2755 = vmatpush1.bf16.msra.mxu0 0
        %2756 = vmatprep.subr.bf16.mxu0 0
        %2757 = vmatpush1.bf16.msra.mxu0 0
        %2758 = vmatprep.subr.bf16.mxu0 0
        %2759 = vmatpush1.bf16.msra.mxu0 0
        %2760 = vmatprep.subr.bf16.mxu0 0
        %2761 = vmatpush1.bf16.msra.mxu0 0
        %2762 = vmatprep.subr.bf16.mxu0 0
        %2763 = vmatpush1.bf16.msra.mxu0 0
        %2764 = vmatprep.subr.bf16.mxu0 0
        %2765 = vmatpush1.bf16.msra.mxu0 0
        %2766 = vmatprep.subr.bf16.mxu0 0
        %2767 = vmatpush1.bf16.msra.mxu0 0
        %2768 = vmatprep.subr.bf16.mxu0 0
        %2769 = vmatpush1.bf16.msra.mxu0 0
        %2770 = vmatprep.mubr.bf16.mxu0 0
        %2771 = vmatmul.mubr.bf16.gmra.mrb[0].mxu0 %v1387
        %v2772 = vpop.f32.mrb[0].mxu0
        %v2773 = vadd.f32 0.0, %v2772
        %v2774 = vpop.f32.mrb[0].mxu0
        %v2775 = vpop.f32.mrb[0].mxu0
        %v2776 = vadd.f32 0.0, %v2775
        %v2777 = vpop.f32.mrb[0].mxu0
        %2778 = vmatprep.mubr.bf16.mxu0 0
        %2779 = vmatmul.mubr.bf16.gmra.mrb[0].mxu0 %v1390
        %v2780 = vpop.f32.mrb[0].mxu0
        %v2781 = vadd.f32 0.0, %v2780
        %v2782 = vpop.f32.mrb[0].mxu0
        %v2783 = vpop.f32.mrb[0].mxu0
        %v2784 = vadd.f32 0.0, %v2783
        %v2785 = vpop.f32.mrb[0].mxu0
        %2786 = vmatprep.mubr.bf16.mxu0 0
        %2787 = vmatmul.mubr.bf16.gmra.mrb[0].mxu0 %v1393
        %v2788 = vpop.f32.mrb[0].mxu0
        %v2789 = vadd.f32 0.0, %v2788
        %v2790 = vpop.f32.mrb[0].mxu0
        %v2791 = vpop.f32.mrb[0].mxu0
        %v2792 = vadd.f32 0.0, %v2791
        %v2793 = vpop.f32.mrb[0].mxu0
        %2794 = vmatprep.mubr.bf16.mxu0 0
        %2795 = vmatmul.mubr.bf16.gmra.mrb[0].mxu0 %v1396
        %v2796 = vpop.f32.mrb[0].mxu0
        %v2797 = vadd.f32 0.0, %v2796
        %v2798 = vpop.f32.mrb[0].mxu0
        %v2799 = vpop.f32.mrb[0].mxu0
        %v2800 = vadd.f32 0.0, %v2799
        %v2801 = vpop.f32.mrb[0].mxu0
        %2802 = vmatprep.mubr.bf16.mxu0 0
        %2803 = vmatmul.mubr.bf16.gmra.mrb[0].mxu0 %v1399
        %v2804 = vpop.f32.mrb[0].mxu0
        %v2805 = vadd.f32 0.0, %v2804
        %v2806 = vpop.f32.mrb[0].mxu0
        %v2807 = vpop.f32.mrb[0].mxu0
        %v2808 = vadd.f32 0.0, %v2807
        %v2809 = vpop.f32.mrb[0].mxu0
        %2810 = vmatprep.mubr.bf16.mxu0 0
        %2811 = vmatmul.mubr.bf16.gmra.mrb[0].mxu0 %v1402
        %v2812 = vpop.f32.mrb[0].mxu0
        %v2813 = vadd.f32 0.0, %v2812
        %v2814 = vpop.f32.mrb[0].mxu0
        %v2815 = vpop.f32.mrb[0].mxu0
        %v2816 = vadd.f32 0.0, %v2815
        %v2817 = vpop.f32.mrb[0].mxu0
        %2818 = vmatprep.mubr.bf16.mxu0 0
        %2819 = vmatmul.mubr.bf16.gmra.mrb[0].mxu0 %v1405
        %v2820 = vpop.f32.mrb[0].mxu0
        %v2821 = vadd.f32 0.0, %v2820
        %v2822 = vpop.f32.mrb[0].mxu0
        %v2823 = vpop.f32.mrb[0].mxu0
        %v2824 = vadd.f32 0.0, %v2823
        %v2825 = vpop.f32.mrb[0].mxu0
        %2826 = vmatprep.mubr.bf16.mxu0 0
        %2827 = vmatmul.mubr.bf16.gmra.mrb[0].mxu0 %v1408
        %v2828 = vpop.f32.mrb[0].mxu0
        %v2829 = vadd.f32 0.0, %v2828
        %v2830 = vpop.f32.mrb[0].mxu0
        %v2831 = vpop.f32.mrb[0].mxu0
        %v2832 = vadd.f32 0.0, %v2831
        %v2833 = vpop.f32.mrb[0].mxu0
        %2834 = vmatprep.mubr.bf16.mxu0 0
        %2835 = vmatmul.mubr.bf16.gmra.mrb[0].mxu0 %v1411
        %v2836 = vpop.f32.mrb[0].mxu0
        %v2837 = vadd.f32 0.0, %v2836
        %v2838 = vpop.f32.mrb[0].mxu0
        %v2839 = vpop.f32.mrb[0].mxu0
        %v2840 = vadd.f32 0.0, %v2839
        %v2841 = vpop.f32.mrb[0].mxu0
        %2842 = vmatprep.mubr.bf16.mxu0 0
        %2843 = vmatmul.mubr.bf16.gmra.mrb[0].mxu0 %v1414
        %v2844 = vpop.f32.mrb[0].mxu0
        %v2845 = vadd.f32 0.0, %v2844
        %v2846 = vpop.f32.mrb[0].mxu0
        %v2847 = vpop.f32.mrb[0].mxu0
        %v2848 = vadd.f32 0.0, %v2847
        %v2849 = vpop.f32.mrb[0].mxu0
        %2850 = vmatprep.mubr.bf16.mxu0 0
        %2851 = vmatmul.mubr.bf16.gmra.mrb[0].mxu0 %v1417
        %v2852 = vpop.f32.mrb[0].mxu0
        %v2853 = vadd.f32 0.0, %v2852
        %v2854 = vpop.f32.mrb[0].mxu0
        %v2855 = vpop.f32.mrb[0].mxu0
        %v2856 = vadd.f32 0.0, %v2855
        %v2857 = vpop.f32.mrb[0].mxu0
        %2858 = vmatprep.mubr.bf16.mxu0 0
        %2859 = vmatmul.mubr.bf16.gmra.mrb[0].mxu0 %v1420
        %v2860 = vpop.f32.mrb[0].mxu0
        %v2861 = vadd.f32 0.0, %v2860
        %v2862 = vpop.f32.mrb[0].mxu0
        %v2863 = vpop.f32.mrb[0].mxu0
        %v2864 = vadd.f32 0.0, %v2863
        %v2865 = vpop.f32.mrb[0].mxu0
        %2866 = vmatprep.mubr.bf16.mxu0 0
        %2867 = vmatmul.mubr.bf16.gmra.mrb[0].mxu0 %v1423
        %v2868 = vpop.f32.mrb[0].mxu0
        %v2869 = vadd.f32 0.0, %v2868
        %v2870 = vpop.f32.mrb[0].mxu0
        %v2871 = vpop.f32.mrb[0].mxu0
        %v2872 = vadd.f32 0.0, %v2871
        %v2873 = vpop.f32.mrb[0].mxu0
        %2874 = vmatprep.mubr.bf16.mxu0 0
        %2875 = vmatmul.mubr.bf16.gmra.mrb[0].mxu0 %v1426
        %v2876 = vpop.f32.mrb[0].mxu0
        %v2877 = vadd.f32 0.0, %v2876
        %v2878 = vpop.f32.mrb[0].mxu0
        %v2879 = vpop.f32.mrb[0].mxu0
        %v2880 = vadd.f32 0.0, %v2879
        %v2881 = vpop.f32.mrb[0].mxu0
        %2882 = vmatprep.mubr.bf16.mxu0 0
        %2883 = vmatmul.mubr.bf16.gmra.mrb[0].mxu0 %v2081
        %v2884 = vpop.f32.mrb[0].mxu0
        %v2885 = vadd.f32 0.0, %v2884
        %v2886 = vpop.f32.mrb[0].mxu0
        %v2887 = vpop.f32.mrb[0].mxu0
        %v2888 = vadd.f32 0.0, %v2887
        %v2889 = vpop.f32.mrb[0].mxu0
        %2890 = vmatprep.mubr.bf16.mxu0 0
        %2891 = vmatmul.mubr.bf16.gmra.mrb[0].mxu0 %v2736
        %v2892 = vpop.f32.mrb[0].mxu0
        %v2893 = vadd.f32 0.0, %v2892
        %v2894 = vpop.f32.mrb[0].mxu0
        %v2895 = vpop.f32.mrb[0].mxu0
        %v2896 = vadd.f32 0.0, %v2895
        %v2897 = vpop.f32.mrb[0].mxu0
        %2898 = vdwg.mxu0
        %v2899 = vadd.f32 %v2684, %v2773
        %v2900 = vadd.f32 %v2685, %v2776
        %v2901 = vadd.f32 %v2686, %v2781
        %v2902 = vadd.f32 %v2687, %v2784
        %v2903 = vadd.f32 %v2688, %v2789
        %v2904 = vadd.f32 %v2689, %v2792
        %v2905 = vadd.f32 %v2690, %v2797
        %v2906 = vadd.f32 %v2691, %v2800
        %v2907 = vadd.f32 %v2692, %v2805
        %v2908 = vadd.f32 %v2693, %v2808
        %v2909 = vadd.f32 %v2694, %v2813
        %v2910 = vadd.f32 %v2695, %v2816
        %v2911 = vadd.f32 %v2696, %v2821
        %v2912 = vadd.f32 %v2697, %v2824
        %v2913 = vadd.f32 %v2698, %v2829
        %v2914 = vadd.f32 %v2699, %v2832
        %v2915 = vadd.f32 %v2700, %v2837
        %v2916 = vadd.f32 %v2701, %v2840
        %v2917 = vadd.f32 %v2702, %v2845
        %v2918 = vadd.f32 %v2703, %v2848
        %v2919 = vadd.f32 %v2704, %v2853
        %v2920 = vadd.f32 %v2705, %v2856
        %v2921 = vadd.f32 %v2706, %v2861
        %v2922 = vadd.f32 %v2707, %v2864
        %v2923 = vadd.f32 %v2708, %v2869
        %v2924 = vadd.f32 %v2709, %v2872
        %v2925 = vadd.f32 %v2710, %v2877
        %v2926 = vadd.f32 %v2711, %v2880
        %v2927 = vadd.f32 %v2712, %v2885
        %v2928 = vadd.f32 %v2713, %v2888
        %v2929 = vadd.f32 %v2714, %v2893
        %v2930 = vadd.f32 %v2715, %v2896
        %v2931 = vld [vmem:[%s2] sm:$0x1]
        %v2933 = vlaneseq
        %v2934 = vshrl.u32 %v2933, 7
        %v2935 = vsub.s32 0, %v2934
        %v2936 = vrot.slane %v2931, %v2935
        %v2938 = vadd.f32 %v2899, %v2936
        %v2939 = vadd.f32 %v2900, %v2936
        %v2940 = vadd.f32 %v2901, %v2936
        %v2941 = vadd.f32 %v2902, %v2936
        %v2942 = vadd.f32 %v2903, %v2936
        %v2943 = vadd.f32 %v2904, %v2936
        %v2944 = vadd.f32 %v2905, %v2936
        %v2945 = vadd.f32 %v2906, %v2936
        %v2946 = vadd.f32 %v2907, %v2936
        %v2947 = vadd.f32 %v2908, %v2936
        %v2948 = vadd.f32 %v2909, %v2936
        %v2949 = vadd.f32 %v2910, %v2936
        %v2950 = vadd.f32 %v2911, %v2936
        %v2951 = vadd.f32 %v2912, %v2936
        %v2952 = vadd.f32 %v2913, %v2936
        %v2953 = vadd.f32 %v2914, %v2936
        %v2954 = vadd.f32 %v2915, %v2936
        %v2955 = vadd.f32 %v2916, %v2936
        %v2956 = vadd.f32 %v2917, %v2936
        %v2957 = vadd.f32 %v2918, %v2936
        %v2958 = vadd.f32 %v2919, %v2936
        %v2959 = vadd.f32 %v2920, %v2936
        %v2960 = vadd.f32 %v2921, %v2936
        %v2961 = vadd.f32 %v2922, %v2936
        %v2962 = vadd.f32 %v2923, %v2936
        %v2963 = vadd.f32 %v2924, %v2936
        %v2964 = vadd.f32 %v2925, %v2936
        %v2965 = vadd.f32 %v2926, %v2936
        %v2966 = vadd.f32 %v2927, %v2936
        %v2967 = vadd.f32 %v2928, %v2936
        %v2968 = vadd.f32 %v2929, %v2936
        %v2969 = vadd.f32 %v2930, %v2936
        %v2970 = vmax.f32 %v2938, 0.0
        %v2971 = vmax.f32 %v2939, 0.0
        %v2972 = vmax.f32 %v2940, 0.0
        %v2973 = vmax.f32 %v2941, 0.0
        %v2974 = vmax.f32 %v2942, 0.0
        %v2975 = vmax.f32 %v2943, 0.0
        %v2976 = vmax.f32 %v2944, 0.0
        %v2977 = vmax.f32 %v2945, 0.0
        %v2978 = vmax.f32 %v2946, 0.0
        %v2979 = vmax.f32 %v2947, 0.0
        %v2980 = vmax.f32 %v2948, 0.0
        %v2981 = vmax.f32 %v2949, 0.0
        %v2982 = vmax.f32 %v2950, 0.0
        %v2983 = vmax.f32 %v2951, 0.0
        %v2984 = vmax.f32 %v2952, 0.0
        %v2985 = vmax.f32 %v2953, 0.0
        %v2986 = vmax.f32 %v2954, 0.0
        %v2987 = vmax.f32 %v2955, 0.0
        %v2988 = vmax.f32 %v2956, 0.0
        %v2989 = vmax.f32 %v2957, 0.0
        %v2990 = vmax.f32 %v2958, 0.0
        %v2991 = vmax.f32 %v2959, 0.0
        %v2992 = vmax.f32 %v2960, 0.0
        %v2993 = vmax.f32 %v2961, 0.0
        %v2994 = vmax.f32 %v2962, 0.0
        %v2995 = vmax.f32 %v2963, 0.0
        %v2996 = vmax.f32 %v2964, 0.0
        %v2997 = vmax.f32 %v2965, 0.0
        %v2998 = vmax.f32 %v2966, 0.0
        %v2999 = vmax.f32 %v2967, 0.0
        %v3000 = vmax.f32 %v2968, 0.0
        %v3001 = vmax.f32 %v2969, 0.0
        %vm3002 = vcmask 261120
        %3003 = vst.msk [vmem:[%s177] sm:$0xff] %vm3002, %v2970
        %3004 = vst.msk [vmem:[%s177 + $0x8] sm:$0xff] %vm3002, %v2971
        %3005 = vst.msk [vmem:[%s177 + $0x10] sm:$0xff] %vm3002, %v2972
        %3006 = vst.msk [vmem:[%s177 + $0x18] sm:$0xff] %vm3002, %v2973
        %3007 = vst.msk [vmem:[%s177 + $0x20] sm:$0xff] %vm3002, %v2974
        %3008 = vst.msk [vmem:[%s177 + $0x28] sm:$0xff] %vm3002, %v2975
        %3009 = vst.msk [vmem:[%s177 + $0x30] sm:$0xff] %vm3002, %v2976
        %3010 = vst.msk [vmem:[%s177 + $0x38] sm:$0xff] %vm3002, %v2977
        %3011 = vst.msk [vmem:[%s177 + $0x40] sm:$0xff] %vm3002, %v2978
        %3012 = vst.msk [vmem:[%s177 + $0x48] sm:$0xff] %vm3002, %v2979
        %3013 = vst.msk [vmem:[%s177 + $0x50] sm:$0xff] %vm3002, %v2980
        %3014 = vst.msk [vmem:[%s177 + $0x58] sm:$0xff] %vm3002, %v2981
        %3015 = vst.msk [vmem:[%s177 + $0x60] sm:$0xff] %vm3002, %v2982
        %3016 = vst.msk [vmem:[%s177 + $0x68] sm:$0xff] %vm3002, %v2983
        %3017 = vst.msk [vmem:[%s177 + $0x70] sm:$0xff] %vm3002, %v2984
        %3018 = vst.msk [vmem:[%s177 + $0x78] sm:$0xff] %vm3002, %v2985
        %3019 = vst.msk [vmem:[%s177 + $0x80] sm:$0xff] %vm3002, %v2986
        %3020 = vst.msk [vmem:[%s177 + $0x88] sm:$0xff] %vm3002, %v2987
        %3021 = vst.msk [vmem:[%s177 + $0x90] sm:$0xff] %vm3002, %v2988
        %3022 = vst.msk [vmem:[%s177 + $0x98] sm:$0xff] %vm3002, %v2989
        %3023 = vst.msk [vmem:[%s177 + $0xa0] sm:$0xff] %vm3002, %v2990
        %3024 = vst.msk [vmem:[%s177 + $0xa8] sm:$0xff] %vm3002, %v2991
        %3025 = vst.msk [vmem:[%s177 + $0xb0] sm:$0xff] %vm3002, %v2992
        %3026 = vst.msk [vmem:[%s177 + $0xb8] sm:$0xff] %vm3002, %v2993
        %3027 = vst.msk [vmem:[%s177 + $0xc0] sm:$0xff] %vm3002, %v2994
        %3028 = vst.msk [vmem:[%s177 + $0xc8] sm:$0xff] %vm3002, %v2995
        %3029 = vst.msk [vmem:[%s177 + $0xd0] sm:$0xff] %vm3002, %v2996
        %3030 = vst.msk [vmem:[%s177 + $0xd8] sm:$0xff] %vm3002, %v2997
        %3031 = vst.msk [vmem:[%s177 + $0xe0] sm:$0xff] %vm3002, %v2998
        %3032 = vst.msk [vmem:[%s177 + $0xe8] sm:$0xff] %vm3002, %v2999
        %3033 = vst.msk [vmem:[%s177 + $0xf0] sm:$0xff] %vm3002, %v3000
        %3034 = vst.msk [vmem:[%s177 + $0xf8] sm:$0xff] %vm3002, %v3001
        %s3035 = sand.u32 %s107, 1
        %s3036 = scalar_lea.sflag [#allocation3], %s3035
        %s3037 = sand.u32 %s107, 1
        %s3038 = smul.addr %s3037, 256
        %s3039 = scalar_lea.vmem [#allocation2], %s3038
        // Predicated region
        $region33: #{tpu_custom_call.1} parent=31 // pred_check
          %p3040 = pneg %p117
        $region34: #{tpu_custom_call.1} parent=31 // pred_check_branch
          %3042 = sbr.rel (%p3040) target = $region36
        $region35: #{tpu_custom_call.1} parent=31 // pred_region
          %s3043 = smul.u32 16, %s22
          %s3045 = ssub.s32 4096, 4096
          %3046 = vsyncadd %s3036, %s3045
          %s3047 = smul.addr %s3043, 2
          %s3048 = smul.addr %s21, 32
          %s3049 = sadd.s32 %s3047, %s3048
          %s3050 = smul.addr %s3049, 128
          %s3051 = scalar_lea.hbm %s3, %s3050
          %s3052 = sshll.u32 %s3039, 4
          %s3053 = int_to_ptr.vmem [resolvable:$true] %s3052
          %3058 = dma.vmem_to_hbm [thread:$0]  %s3053, 4096, %s3051, %s3036, 128, 128, 8
        $region36: #{tpu_custom_call.1} parent=31 // pred_fallthru
          _
      $region32: #{tpu_custom_call.1} parent=5 // pred_fallthru
        _
      %p3059 = scmp.le.s32.totalorder 2, %s12
      // Predicated region
      $region37: #{tpu_custom_call.1} parent=5 // pred_check
        %p3060 = pneg %p3059
      $region38: #{tpu_custom_call.1} parent=5 // pred_check_branch
        %3062 = sbr.rel (%p3060) target = $region40
      $region39: #{tpu_custom_call.1} parent=5 // pred_region
        %s3063 = ssub.s32 %s12, 2
        // Predicated region
        $region41: #{tpu_custom_call.1} parent=39 // pred_check
          %p3064 = pneg %p123
        $region42: #{tpu_custom_call.1} parent=39 // pred_check_branch
          %3066 = sbr.rel (%p3064) target = $region44
        $region43: #{tpu_custom_call.1} parent=39 // pred_region
          %s3067 = sand.u32 %s108, 1
          %s3068 = scalar_lea.sflag [#allocation3], %s3067
          %s3069 = sand.u32 %s108, 1
          %s3070 = smul.addr %s3069, 256
          %s3071 = scalar_lea.vmem [#allocation2], %s3070
          %3072 = dma.done %s3068, 4096
        $region44: #{tpu_custom_call.1} parent=39 // pred_fallthru
          _
      $region40: #{tpu_custom_call.1} parent=5 // pred_fallthru
        _
    $region6: #{tpu_custom_call.1} parent=1 // loop_footer
      %s16 = sadd.s32 1, %s12
    $region7: #{tpu_custom_call.1} parent=1 // loop_footer_branch
      %11 = sbr.rel target = $region3
    $region8: #{tpu_custom_call.1} parent=1 // loop_exit
      _
    %3073 = vsyncpa [#allocation3], 1
    %s3074 = scalar_lea.sflag [#allocation3], 1
    %3075 = vsyncpa %s3074, 1

</llo_original>
